<compile_context>
chip_gen: v6e
topology: v6e:2x2x1
jax: 0.10.0
libtpu: 0.0.40
codegen_flags: <defaults>
</compile_context>

<pallas_src>
import functools

import jax
import jax.numpy as jnp
from jax.experimental import pallas as pl
from jax.experimental.pallas import tpu as pltpu


def _round_up(x, m):
    return (x + m - 1) // m * m


def _lstm_cls_kernel(x_ref, wih_ref, whh_ref, b_ref, wfc_ref, bfc_ref,
                     out_ref, gx_scr, h_scr, c_scr, *, T, Tc, Bb, Hp):
    t_idx = pl.program_id(1)
    n_chunks = pl.num_programs(1)

    # ---- init carried state at the first time chunk of each batch block ------
    @pl.when(t_idx == 0)
    def _():
        h_scr[...] = jnp.zeros_like(h_scr)
        c_scr[...] = jnp.zeros_like(c_scr)

    # ---- Phase 1: hoisted input projection for this chunk (one bf16 MXU matmul)
    gx_scr[...] = (
        jnp.dot(x_ref[...], wih_ref[...], preferred_element_type=jnp.float32)
        + b_ref[...]
    )

    w_hh = whh_ref[...]          # (Hp, 4Hp) bf16, resident for the whole chunk
    ragged = (T % Tc) != 0       # static: only mask when T doesn't divide evenly

    # ---- Phase 2: serial recurrence over the Tc steps of this chunk ----------
    def step(s, carry):
        h, c = carry
        base = pl.multiple_of(s * Bb, 8)                       # Bb is a multiple of 8
        gates = gx_scr[pl.ds(base, Bb), :] + jnp.dot(
            h.astype(jnp.bfloat16), w_hh, preferred_element_type=jnp.float32)
        i_g = jax.nn.sigmoid(gates[:, 0 * Hp:1 * Hp])
        f_g = jax.nn.sigmoid(gates[:, 1 * Hp:2 * Hp])
        g_g = jnp.tanh(gates[:, 2 * Hp:3 * Hp])
        o_g = jax.nn.sigmoid(gates[:, 3 * Hp:4 * Hp])
        c_new = f_g * c + i_g * g_g
        h_new = o_g * jnp.tanh(c_new)
        if ragged:
            valid = (t_idx * Tc + s) < T                       # padded timestep -> no-op
            h_new = jnp.where(valid, h_new, h)
            c_new = jnp.where(valid, c_new, c)
        return h_new, c_new

    h, c = jax.lax.fori_loop(0, Tc, step, (h_scr[...], c_scr[...]),
                             unroll=min(8, Tc))
    h_scr[...] = h
    c_scr[...] = c

    # ---- Phase 3: Linear(H,1) + sigmoid as VPU mul + lane reduction ----------
    @pl.when(t_idx == n_chunks - 1)
    def _():
        logits = (jnp.sum(h_scr[...] * wfc_ref[...], axis=-1, keepdims=True)
                  + bfc_ref[...])
        out_ref[...] = jax.nn.sigmoid(logits)


def lstm_classifier_forward(x_tokens, params, *, time_chunk=8, batch_blocks=1):
    """x_tokens: (B, T) int32 token ids. Returns (B,) float32 probabilities.

    batch_blocks=2 shards the batch across both TensorCores on v7x; leave at 1 on
    single-TC chips (v5e/v6e) to avoid doubling the serial recurrence length.
    """
    emb = params["embedding"]          # (V, E)
    w_ih = params["w_ih"]              # (E, 4H)   gate order [i, f, g, o]
    w_hh = params["w_hh"]              # (H, 4H)
    b = params["b"]                    # (1, 4H)   (b_ih + b_hh)
    w_fc = params["w_fc"]              # (1, H)
    b_fc = params["b_fc"]              # (1, 1)

    B, T = x_tokens.shape
    E = emb.shape[1]
    H = w_hh.shape[0]

    # --- pad hidden dim to a lane multiple (128) with zero weights (exact) ----
    Hp = max(128, _round_up(H, 128))
    dH = Hp - H

    def pad_gate_cols(w):              # (..., 4H) -> (..., 4Hp), per-gate zero pad
        w4 = w.reshape(*w.shape[:-1], 4, H)
        w4 = jnp.pad(w4, [(0, 0)] * (w4.ndim - 1) + [(0, dH)])
        return w4.reshape(*w.shape[:-1], 4 * Hp)

    w_ih_p = pad_gate_cols(w_ih).astype(jnp.bfloat16)               # (E, 4Hp)
    w_hh_p = jnp.pad(pad_gate_cols(w_hh), ((0, dH), (0, 0)))        # (Hp, 4Hp)
    w_hh_p = w_hh_p.astype(jnp.bfloat16)
    b_p = pad_gate_cols(b)                                          # (1, 4Hp) f32
    w_fc_p = jnp.pad(w_fc, ((0, 0), (0, dH)))                       # (1, Hp)  f32
    emb_bf = emb.astype(jnp.bfloat16)

    # --- pad batch (token 0 == padding_idx -> zero embedding; rows sliced off) -
    batch_blocks = max(1, int(batch_blocks))
    B_pad = _round_up(B, 8 * batch_blocks)
    if B_pad != B:
        x_tokens = jnp.pad(x_tokens, ((0, B_pad - B), (0, 0)))
    Bb = B_pad // batch_blocks

    # --- pad time to a chunk multiple (padded steps masked inside the kernel) -
    Tc = max(1, min(int(time_chunk), T))
    T_pad = _round_up(T, Tc)
    if T_pad != T:
        x_tokens = jnp.pad(x_tokens, ((0, 0), (0, T_pad - T)))
    n_chunks = T_pad // Tc

    # --- time-major bf16 embedding gather, chunked per (batch block, time chunk)
    x = jnp.take(emb_bf, x_tokens.T, axis=0)                        # (T_pad, B_pad, E)
    x = x.reshape(n_chunks, Tc, batch_blocks, Bb, E)
    x = jnp.transpose(x, (2, 0, 1, 3, 4)).reshape(batch_blocks, n_chunks, Tc * Bb, E)

    # --- explicit VMEM budget (double-buffered inputs + scratch) ---------------
    vmem_needed = (
        2 * Tc * Bb * E * 2            # x chunk (bf16, double-buffered)
        + 2 * E * 4 * Hp * 2           # w_ih (bf16)
        + 2 * Hp * 4 * Hp * 2          # w_hh (bf16)
        + 2 * 4 * Hp * 4               # b
        + 2 * Hp * 4 + 64              # w_fc, b_fc
        + 2 * Bb * 4                   # out
        + Tc * Bb * 4 * Hp * 4         # gx scratch (f32)
        + 2 * Bb * Hp * 4              # h, c scratch (f32)
    )
    vmem_limit = int(min(100 * 1024 * 1024, max(32 * 1024 * 1024, 2 * vmem_needed)))

    kernel = functools.partial(_lstm_cls_kernel, T=T, Tc=Tc, Bb=Bb, Hp=Hp)

    out = pl.pallas_call(
        kernel,
        out_shape=jax.ShapeDtypeStruct((B_pad, 1), jnp.float32),
        grid=(batch_blocks, n_chunks),
        in_specs=[
            pl.BlockSpec((None, None, Tc * Bb, E), lambda bi, ti: (bi, ti, 0, 0)),
            pl.BlockSpec((E, 4 * Hp), lambda bi, ti: (0, 0)),
            pl.BlockSpec((Hp, 4 * Hp), lambda bi, ti: (0, 0)),
            pl.BlockSpec((1, 4 * Hp), lambda bi, ti: (0, 0)),
            pl.BlockSpec((1, Hp), lambda bi, ti: (0, 0)),
            pl.BlockSpec((1, 1), lambda bi, ti: (0, 0)),
        ],
        out_specs=pl.BlockSpec((Bb, 1), lambda bi, ti: (bi, 0)),
        scratch_shapes=[
            pltpu.VMEM((Tc * Bb, 4 * Hp), jnp.float32),   # Gx for the current chunk
            pltpu.VMEM((Bb, Hp), jnp.float32),            # h carry
            pltpu.VMEM((Bb, Hp), jnp.float32),            # c carry
        ],
        compiler_params=pltpu.CompilerParams(
            dimension_semantics=("parallel", "arbitrary"),
            vmem_limit_bytes=vmem_limit,
        ),
    )(x, w_ih_p, w_hh_p, b_p, w_fc_p, b_fc)

    return out[:B, 0]   # matches .squeeze(1)


def make_params(key, vocab_size, embed_dim, hidden_dim):
    ks = jax.random.split(key, 7)
    bound = 1.0 / jnp.sqrt(hidden_dim)
    emb = jax.random.normal(ks[0], (vocab_size, embed_dim), jnp.float32)
    emb = emb.at[0].set(0.0)   # padding_idx=0
    w_ih = jax.random.uniform(ks[1], (embed_dim, 4 * hidden_dim), jnp.float32, -bound, bound)
    w_hh = jax.random.uniform(ks[2], (hidden_dim, 4 * hidden_dim), jnp.float32, -bound, bound)
    b_ih = jax.random.uniform(ks[3], (4 * hidden_dim,), jnp.float32, -bound, bound)
    b_hh = jax.random.uniform(ks[4], (4 * hidden_dim,), jnp.float32, -bound, bound)
    fcb = 1.0 / jnp.sqrt(hidden_dim)
    w_fc = jax.random.uniform(ks[5], (1, hidden_dim), jnp.float32, -fcb, fcb)
    b_fc = jax.random.uniform(ks[6], (1, 1), jnp.float32, -fcb, fcb)
    return {
        "embedding": emb,
        "w_ih": w_ih,
        "w_hh": w_hh,
        "b": (b_ih + b_hh)[None, :],
        "w_fc": w_fc,
        "b_fc": b_fc,
    }


def reference_forward(x_tokens, params):
    """Pure-JAX f32 reference (lax.scan LSTM) for correctness checking."""
    emb = jnp.take(params["embedding"], x_tokens, axis=0)   # (B, T, E)
    B, T, E = emb.shape
    H = params["w_hh"].shape[0]

    def step(carry, x_t):
        h, c = carry
        gates = x_t @ params["w_ih"] + h @ params["w_hh"] + params["b"]
        i = jax.nn.sigmoid(gates[:, 0 * H:1 * H])
        f = jax.nn.sigmoid(gates[:, 1 * H:2 * H])
        g = jnp.tanh(gates[:, 2 * H:3 * H])
        o = jax.nn.sigmoid(gates[:, 3 * H:4 * H])
        c = f * c + i * g
        h = o * jnp.tanh(c)
        return (h, c), None

    init = (jnp.zeros((B, H), jnp.float32), jnp.zeros((B, H), jnp.float32))
    (h, _), _ = jax.lax.scan(step, init, jnp.transpose(emb, (1, 0, 2)))
    return jax.nn.sigmoid(h @ params["w_fc"].T + params["b_fc"])[:, 0]


if __name__ == "__main__":
    # Small shapes consistent with the module: batch=2, seq=8, vocab=50,
    # embed_dim=16, hidden_dim=32.
    B, T, V, E, H = 2, 8, 50, 16, 32

    key = jax.random.PRNGKey(0)
    k_tok, k_par = jax.random.split(key)
    params = make_params(k_par, V, E, H)
    x_tokens = jax.random.randint(k_tok, (B, T), 0, V, dtype=jnp.int32)

    out = jax.block_until_ready(lstm_classifier_forward(x_tokens, params))
    ref = jax.block_until_ready(reference_forward(x_tokens, params))

    assert out.shape == (B,)
    # bf16 MXU operands (embedding / W_ih / W_hh) vs f32 reference -> relaxed tolerance.
    assert jnp.allclose(out, ref, atol=2e-2, rtol=2e-2), (out, ref)
    print("KERNEL_OK")
</pallas_src>

<mosaic_0001>
module attributes {stable_mosaic.version = 11 : i64} {
  func.func @_lstm_cls_kernel(%arg0: i32, %arg1: i32, %arg2: memref<1x1x64x16xbf16, #tpu.memory_space<vmem>>, %arg3: memref<16x512xbf16, #tpu.memory_space<vmem>>, %arg4: memref<128x512xbf16, #tpu.memory_space<vmem>>, %arg5: memref<1x512xf32, #tpu.memory_space<vmem>>, %arg6: memref<1x128xf32, #tpu.memory_space<vmem>>, %arg7: memref<1x1xf32, #tpu.memory_space<vmem>>, %arg8: memref<8x1xf32, #tpu.memory_space<vmem>>, %arg9: memref<64x512xf32, #tpu.memory_space<vmem>>, %arg10: memref<8x128xf32, #tpu.memory_space<vmem>>, %arg11: memref<8x128xf32, #tpu.memory_space<vmem>>) attributes {dimension_semantics = [#tpu.dimension_semantics<parallel>, #tpu.dimension_semantics<arbitrary>], iteration_bounds = array<i64: 1, 1>, scalar_prefetch = 0 : i64, scratch_operands = 3 : i64, tpu.core_type = #tpu.core_type<tc>, window_params = [{transform_indices = @transform_0, window_bounds = array<i64: 1, 1, 64, 16>}, {pipeline_mode = #tpu.pipeline_mode<synchronous>, transform_indices = @transform_1, window_bounds = array<i64: 16, 512>}, {pipeline_mode = #tpu.pipeline_mode<synchronous>, transform_indices = @transform_2, window_bounds = array<i64: 128, 512>}, {pipeline_mode = #tpu.pipeline_mode<synchronous>, transform_indices = @transform_3, window_bounds = array<i64: 1, 512>}, {pipeline_mode = #tpu.pipeline_mode<synchronous>, transform_indices = @transform_4, window_bounds = array<i64: 1, 128>}, {pipeline_mode = #tpu.pipeline_mode<synchronous>, transform_indices = @transform_5, window_bounds = array<i64: 1, 1>}, {transform_indices = @transform_6, window_bounds = array<i64: 8, 1>}]} {
    %c0_i32 = arith.constant 0 : i32
    %0 = arith.cmpi eq, %arg1, %c0_i32 : i32
    %1 = arith.extui %0 : i1 to i32
    %c0_i32_0 = arith.constant 0 : i32
    %2 = arith.cmpi ne, %1, %c0_i32_0 : i32
    scf.if %2 {
      %cst_71 = arith.constant 0.000000e+00 : f32
      %275 = vector.broadcast %cst_71 : f32 to vector<8x128xf32>
      %c0_72 = arith.constant 0 : index
      %c0_73 = arith.constant 0 : index
      %276 = vector.load %arg10[%c0_72, %c0_73] : memref<8x128xf32, #tpu.memory_space<vmem>>, vector<8x128xf32>
      tpu.vector_store %arg10[%c0_72, %c0_73], %275 {strides = array<i32>} : memref<8x128xf32, #tpu.memory_space<vmem>>, vector<8x128xf32>,
      %cst_74 = arith.constant 0.000000e+00 : f32
      %277 = vector.broadcast %cst_74 : f32 to vector<8x128xf32>
      %c0_75 = arith.constant 0 : index
      %c0_76 = arith.constant 0 : index
      %278 = vector.load %arg11[%c0_75, %c0_76] : memref<8x128xf32, #tpu.memory_space<vmem>>, vector<8x128xf32>
      tpu.vector_store %arg11[%c0_75, %c0_76], %277 {strides = array<i32>} : memref<8x128xf32, #tpu.memory_space<vmem>>, vector<8x128xf32>,
    } else {
    }
    %c0 = arith.constant 0 : index
    %c0_1 = arith.constant 0 : index
    %c0_2 = arith.constant 0 : index
    %c0_3 = arith.constant 0 : index
    %3 = vector.load %arg2[%c0, %c0_1, %c0_2, %c0_3] : memref<1x1x64x16xbf16, #tpu.memory_space<vmem>>, vector<1x1x64x16xbf16>
    %4 = vector.shape_cast %3 : vector<1x1x64x16xbf16> to vector<64x16xbf16>
    %c0_4 = arith.constant 0 : index
    %c0_5 = arith.constant 0 : index
    %5 = vector.load %arg3[%c0_4, %c0_5] : memref<16x512xbf16, #tpu.memory_space<vmem>>, vector<16x512xbf16>
    %cst = arith.constant dense<0.000000e+00> : vector<64x512xf32>
    %6 = tpu.matmul %4, %5, %cst {dimension_numbers = #tpu.dot_dimension_numbers<[1], [0], [0], [1], [0, 0, 1, 1], [], []>} : vector<64x16xbf16>, vector<16x512xbf16>, vector<64x512xf32> -> vector<64x512xf32>
    %c0_6 = arith.constant 0 : index
    %c0_7 = arith.constant 0 : index
    %7 = vector.load %arg5[%c0_6, %c0_7] : memref<1x512xf32, #tpu.memory_space<vmem>>, vector<1x512xf32>
    %8 = vector.broadcast %7 : vector<1x512xf32> to vector<64x512xf32>
    %9 = arith.addf %6, %8 : vector<64x512xf32>
    %c0_8 = arith.constant 0 : index
    %c0_9 = arith.constant 0 : index
    %10 = vector.load %arg9[%c0_8, %c0_9] : memref<64x512xf32, #tpu.memory_space<vmem>>, vector<64x512xf32>
    tpu.vector_store %arg9[%c0_8, %c0_9], %9 {strides = array<i32>} : memref<64x512xf32, #tpu.memory_space<vmem>>, vector<64x512xf32>,
    %c0_10 = arith.constant 0 : index
    %c0_11 = arith.constant 0 : index
    %11 = vector.load %arg4[%c0_10, %c0_11] : memref<128x512xbf16, #tpu.memory_space<vmem>>, vector<128x512xbf16>
    %c0_12 = arith.constant 0 : index
    %c0_13 = arith.constant 0 : index
    %12 = vector.load %arg10[%c0_12, %c0_13] : memref<8x128xf32, #tpu.memory_space<vmem>>, vector<8x128xf32>
    %c0_14 = arith.constant 0 : index
    %c0_15 = arith.constant 0 : index
    %13 = vector.load %arg11[%c0_14, %c0_15] : memref<8x128xf32, #tpu.memory_space<vmem>>, vector<8x128xf32>
    %c0_i32_16 = arith.constant 0 : i32
    %c8_i32 = arith.constant 8 : i32
    %14 = arith.muli %c0_i32_16, %c8_i32 : i32
    %15 = tpu.assume_multiple %14, 8 : i32
    %16 = arith.index_cast %15 : i32 to index
    %c0_17 = arith.constant 0 : index
    %17 = vector.load %arg9[%16, %c0_17] : memref<64x512xf32, #tpu.memory_space<vmem>>, vector<8x512xf32>
    %18 = arith.truncf %12 : vector<8x128xf32> to vector<8x128xbf16>
    %cst_18 = arith.constant dense<0.000000e+00> : vector<8x512xf32>
    %19 = tpu.matmul %18, %11, %cst_18 {dimension_numbers = #tpu.dot_dimension_numbers<[1], [0], [0], [1], [0, 0, 1, 1], [], []>} : vector<8x128xbf16>, vector<128x512xbf16>, vector<8x512xf32> -> vector<8x512xf32>
    %20 = arith.addf %17, %19 : vector<8x512xf32>
    %21 = vector.extract_strided_slice %20 {offsets = [0, 0], sizes = [8, 128], strides = [1, 1]} : vector<8x512xf32> to vector<8x128xf32>
    %22 = arith.negf %21 : vector<8x128xf32>
    %23 = math.exp %22 : vector<8x128xf32>
    %cst_19 = arith.constant 1.000000e+00 : f32
    %24 = vector.broadcast %cst_19 : f32 to vector<8x128xf32>
    %25 = arith.addf %24, %23 : vector<8x128xf32>
    %26 = arith.divf %24, %25 : vector<8x128xf32>
    %27 = vector.extract_strided_slice %20 {offsets = [0, 128], sizes = [8, 128], strides = [1, 1]} : vector<8x512xf32> to vector<8x128xf32>
    %28 = arith.negf %27 : vector<8x128xf32>
    %29 = math.exp %28 : vector<8x128xf32>
    %cst_20 = arith.constant 1.000000e+00 : f32
    %30 = vector.broadcast %cst_20 : f32 to vector<8x128xf32>
    %31 = arith.addf %30, %29 : vector<8x128xf32>
    %32 = arith.divf %30, %31 : vector<8x128xf32>
    %33 = vector.extract_strided_slice %20 {offsets = [0, 256], sizes = [8, 128], strides = [1, 1]} : vector<8x512xf32> to vector<8x128xf32>
    %34 = math.tanh %33 : vector<8x128xf32>
    %35 = vector.extract_strided_slice %20 {offsets = [0, 384], sizes = [8, 128], strides = [1, 1]} : vector<8x512xf32> to vector<8x128xf32>
    %36 = arith.negf %35 : vector<8x128xf32>
    %37 = math.exp %36 : vector<8x128xf32>
    %cst_21 = arith.constant 1.000000e+00 : f32
    %38 = vector.broadcast %cst_21 : f32 to vector<8x128xf32>
    %39 = arith.addf %38, %37 : vector<8x128xf32>
    %40 = arith.divf %38, %39 : vector<8x128xf32>
    %41 = arith.mulf %32, %13 : vector<8x128xf32>
    %42 = arith.mulf %26, %34 : vector<8x128xf32>
    %43 = arith.addf %41, %42 : vector<8x128xf32>
    %44 = math.tanh %43 : vector<8x128xf32>
    %45 = arith.mulf %40, %44 : vector<8x128xf32>
    %c1_i32 = arith.constant 1 : i32
    %c8_i32_22 = arith.constant 8 : i32
    %46 = arith.muli %c1_i32, %c8_i32_22 : i32
    %47 = tpu.assume_multiple %46, 8 : i32
    %48 = arith.index_cast %47 : i32 to index
    %c0_23 = arith.constant 0 : index
    %49 = vector.load %arg9[%48, %c0_23] : memref<64x512xf32, #tpu.memory_space<vmem>>, vector<8x512xf32>
    %50 = arith.truncf %45 : vector<8x128xf32> to vector<8x128xbf16>
    %cst_24 = arith.constant dense<0.000000e+00> : vector<8x512xf32>
    %51 = tpu.matmul %50, %11, %cst_24 {dimension_numbers = #tpu.dot_dimension_numbers<[1], [0], [0], [1], [0, 0, 1, 1], [], []>} : vector<8x128xbf16>, vector<128x512xbf16>, vector<8x512xf32> -> vector<8x512xf32>
    %52 = arith.addf %49, %51 : vector<8x512xf32>
    %53 = vector.extract_strided_slice %52 {offsets = [0, 0], sizes = [8, 128], strides = [1, 1]} : vector<8x512xf32> to vector<8x128xf32>
    %54 = arith.negf %53 : vector<8x128xf32>
    %55 = math.exp %54 : vector<8x128xf32>
    %cst_25 = arith.constant 1.000000e+00 : f32
    %56 = vector.broadcast %cst_25 : f32 to vector<8x128xf32>
    %57 = arith.addf %56, %55 : vector<8x128xf32>
    %58 = arith.divf %56, %57 : vector<8x128xf32>
    %59 = vector.extract_strided_slice %52 {offsets = [0, 128], sizes = [8, 128], strides = [1, 1]} : vector<8x512xf32> to vector<8x128xf32>
    %60 = arith.negf %59 : vector<8x128xf32>
    %61 = math.exp %60 : vector<8x128xf32>
    %cst_26 = arith.constant 1.000000e+00 : f32
    %62 = vector.broadcast %cst_26 : f32 to vector<8x128xf32>
    %63 = arith.addf %62, %61 : vector<8x128xf32>
    %64 = arith.divf %62, %63 : vector<8x128xf32>
    %65 = vector.extract_strided_slice %52 {offsets = [0, 256], sizes = [8, 128], strides = [1, 1]} : vector<8x512xf32> to vector<8x128xf32>
    %66 = math.tanh %65 : vector<8x128xf32>
    %67 = vector.extract_strided_slice %52 {offsets = [0, 384], sizes = [8, 128], strides = [1, 1]} : vector<8x512xf32> to vector<8x128xf32>
    %68 = arith.negf %67 : vector<8x128xf32>
    %69 = math.exp %68 : vector<8x128xf32>
    %cst_27 = arith.constant 1.000000e+00 : f32
    %70 = vector.broadcast %cst_27 : f32 to vector<8x128xf32>
    %71 = arith.addf %70, %69 : vector<8x128xf32>
    %72 = arith.divf %70, %71 : vector<8x128xf32>
    %73 = arith.mulf %64, %43 : vector<8x128xf32>
    %74 = arith.mulf %58, %66 : vector<8x128xf32>
    %75 = arith.addf %73, %74 : vector<8x128xf32>
    %76 = math.tanh %75 : vector<8x128xf32>
    %77 = arith.mulf %72, %76 : vector<8x128xf32>
    %c2_i32 = arith.constant 2 : i32
    %c8_i32_28 = arith.constant 8 : i32
    %78 = arith.muli %c2_i32, %c8_i32_28 : i32
    %79 = tpu.assume_multiple %78, 8 : i32
    %80 = arith.index_cast %79 : i32 to index
    %c0_29 = arith.constant 0 : index
    %81 = vector.load %arg9[%80, %c0_29] : memref<64x512xf32, #tpu.memory_space<vmem>>, vector<8x512xf32>
    %82 = arith.truncf %77 : vector<8x128xf32> to vector<8x128xbf16>
    %cst_30 = arith.constant dense<0.000000e+00> : vector<8x512xf32>
    %83 = tpu.matmul %82, %11, %cst_30 {dimension_numbers = #tpu.dot_dimension_numbers<[1], [0], [0], [1], [0, 0, 1, 1], [], []>} : vector<8x128xbf16>, vector<128x512xbf16>, vector<8x512xf32> -> vector<8x512xf32>
    %84 = arith.addf %81, %83 : vector<8x512xf32>
    %85 = vector.extract_strided_slice %84 {offsets = [0, 0], sizes = [8, 128], strides = [1, 1]} : vector<8x512xf32> to vector<8x128xf32>
    %86 = arith.negf %85 : vector<8x128xf32>
    %87 = math.exp %86 : vector<8x128xf32>
    %cst_31 = arith.constant 1.000000e+00 : f32
    %88 = vector.broadcast %cst_31 : f32 to vector<8x128xf32>
    %89 = arith.addf %88, %87 : vector<8x128xf32>
    %90 = arith.divf %88, %89 : vector<8x128xf32>
    %91 = vector.extract_strided_slice %84 {offsets = [0, 128], sizes = [8, 128], strides = [1, 1]} : vector<8x512xf32> to vector<8x128xf32>
    %92 = arith.negf %91 : vector<8x128xf32>
    %93 = math.exp %92 : vector<8x128xf32>
    %cst_32 = arith.constant 1.000000e+00 : f32
    %94 = vector.broadcast %cst_32 : f32 to vector<8x128xf32>
    %95 = arith.addf %94, %93 : vector<8x128xf32>
    %96 = arith.divf %94, %95 : vector<8x128xf32>
    %97 = vector.extract_strided_slice %84 {offsets = [0, 256], sizes = [8, 128], strides = [1, 1]} : vector<8x512xf32> to vector<8x128xf32>
    %98 = math.tanh %97 : vector<8x128xf32>
    %99 = vector.extract_strided_slice %84 {offsets = [0, 384], sizes = [8, 128], strides = [1, 1]} : vector<8x512xf32> to vector<8x128xf32>
    %100 = arith.negf %99 : vector<8x128xf32>
    %101 = math.exp %100 : vector<8x128xf32>
    %cst_33 = arith.constant 1.000000e+00 : f32
    %102 = vector.broadcast %cst_33 : f32 to vector<8x128xf32>
    %103 = arith.addf %102, %101 : vector<8x128xf32>
    %104 = arith.divf %102, %103 : vector<8x128xf32>
    %105 = arith.mulf %96, %75 : vector<8x128xf32>
    %106 = arith.mulf %90, %98 : vector<8x128xf32>
    %107 = arith.addf %105, %106 : vector<8x128xf32>
    %108 = math.tanh %107 : vector<8x128xf32>
    %109 = arith.mulf %104, %108 : vector<8x128xf32>
    %c3_i32 = arith.constant 3 : i32
    %c8_i32_34 = arith.constant 8 : i32
    %110 = arith.muli %c3_i32, %c8_i32_34 : i32
    %111 = tpu.assume_multiple %110, 8 : i32
    %112 = arith.index_cast %111 : i32 to index
    %c0_35 = arith.constant 0 : index
    %113 = vector.load %arg9[%112, %c0_35] : memref<64x512xf32, #tpu.memory_space<vmem>>, vector<8x512xf32>
    %114 = arith.truncf %109 : vector<8x128xf32> to vector<8x128xbf16>
    %cst_36 = arith.constant dense<0.000000e+00> : vector<8x512xf32>
    %115 = tpu.matmul %114, %11, %cst_36 {dimension_numbers = #tpu.dot_dimension_numbers<[1], [0], [0], [1], [0, 0, 1, 1], [], []>} : vector<8x128xbf16>, vector<128x512xbf16>, vector<8x512xf32> -> vector<8x512xf32>
    %116 = arith.addf %113, %115 : vector<8x512xf32>
    %117 = vector.extract_strided_slice %116 {offsets = [0, 0], sizes = [8, 128], strides = [1, 1]} : vector<8x512xf32> to vector<8x128xf32>
    %118 = arith.negf %117 : vector<8x128xf32>
    %119 = math.exp %118 : vector<8x128xf32>
    %cst_37 = arith.constant 1.000000e+00 : f32
    %120 = vector.broadcast %cst_37 : f32 to vector<8x128xf32>
    %121 = arith.addf %120, %119 : vector<8x128xf32>
    %122 = arith.divf %120, %121 : vector<8x128xf32>
    %123 = vector.extract_strided_slice %116 {offsets = [0, 128], sizes = [8, 128], strides = [1, 1]} : vector<8x512xf32> to vector<8x128xf32>
    %124 = arith.negf %123 : vector<8x128xf32>
    %125 = math.exp %124 : vector<8x128xf32>
    %cst_38 = arith.constant 1.000000e+00 : f32
    %126 = vector.broadcast %cst_38 : f32 to vector<8x128xf32>
    %127 = arith.addf %126, %125 : vector<8x128xf32>
    %128 = arith.divf %126, %127 : vector<8x128xf32>
    %129 = vector.extract_strided_slice %116 {offsets = [0, 256], sizes = [8, 128], strides = [1, 1]} : vector<8x512xf32> to vector<8x128xf32>
    %130 = math.tanh %129 : vector<8x128xf32>
    %131 = vector.extract_strided_slice %116 {offsets = [0, 384], sizes = [8, 128], strides = [1, 1]} : vector<8x512xf32> to vector<8x128xf32>
    %132 = arith.negf %131 : vector<8x128xf32>
    %133 = math.exp %132 : vector<8x128xf32>
    %cst_39 = arith.constant 1.000000e+00 : f32
    %134 = vector.broadcast %cst_39 : f32 to vector<8x128xf32>
    %135 = arith.addf %134, %133 : vector<8x128xf32>
    %136 = arith.divf %134, %135 : vector<8x128xf32>
    %137 = arith.mulf %128, %107 : vector<8x128xf32>
    %138 = arith.mulf %122, %130 : vector<8x128xf32>
    %139 = arith.addf %137, %138 : vector<8x128xf32>
    %140 = math.tanh %139 : vector<8x128xf32>
    %141 = arith.mulf %136, %140 : vector<8x128xf32>
    %c4_i32 = arith.constant 4 : i32
    %c8_i32_40 = arith.constant 8 : i32
    %142 = arith.muli %c4_i32, %c8_i32_40 : i32
    %143 = tpu.assume_multiple %142, 8 : i32
    %144 = arith.index_cast %143 : i32 to index
    %c0_41 = arith.constant 0 : index
    %145 = vector.load %arg9[%144, %c0_41] : memref<64x512xf32, #tpu.memory_space<vmem>>, vector<8x512xf32>
    %146 = arith.truncf %141 : vector<8x128xf32> to vector<8x128xbf16>
    %cst_42 = arith.constant dense<0.000000e+00> : vector<8x512xf32>
    %147 = tpu.matmul %146, %11, %cst_42 {dimension_numbers = #tpu.dot_dimension_numbers<[1], [0], [0], [1], [0, 0, 1, 1], [], []>} : vector<8x128xbf16>, vector<128x512xbf16>, vector<8x512xf32> -> vector<8x512xf32>
    %148 = arith.addf %145, %147 : vector<8x512xf32>
    %149 = vector.extract_strided_slice %148 {offsets = [0, 0], sizes = [8, 128], strides = [1, 1]} : vector<8x512xf32> to vector<8x128xf32>
    %150 = arith.negf %149 : vector<8x128xf32>
    %151 = math.exp %150 : vector<8x128xf32>
    %cst_43 = arith.constant 1.000000e+00 : f32
    %152 = vector.broadcast %cst_43 : f32 to vector<8x128xf32>
    %153 = arith.addf %152, %151 : vector<8x128xf32>
    %154 = arith.divf %152, %153 : vector<8x128xf32>
    %155 = vector.extract_strided_slice %148 {offsets = [0, 128], sizes = [8, 128], strides = [1, 1]} : vector<8x512xf32> to vector<8x128xf32>
    %156 = arith.negf %155 : vector<8x128xf32>
    %157 = math.exp %156 : vector<8x128xf32>
    %cst_44 = arith.constant 1.000000e+00 : f32
    %158 = vector.broadcast %cst_44 : f32 to vector<8x128xf32>
    %159 = arith.addf %158, %157 : vector<8x128xf32>
    %160 = arith.divf %158, %159 : vector<8x128xf32>
    %161 = vector.extract_strided_slice %148 {offsets = [0, 256], sizes = [8, 128], strides = [1, 1]} : vector<8x512xf32> to vector<8x128xf32>
    %162 = math.tanh %161 : vector<8x128xf32>
    %163 = vector.extract_strided_slice %148 {offsets = [0, 384], sizes = [8, 128], strides = [1, 1]} : vector<8x512xf32> to vector<8x128xf32>
    %164 = arith.negf %163 : vector<8x128xf32>
    %165 = math.exp %164 : vector<8x128xf32>
    %cst_45 = arith.constant 1.000000e+00 : f32
    %166 = vector.broadcast %cst_45 : f32 to vector<8x128xf32>
    %167 = arith.addf %166, %165 : vector<8x128xf32>
    %168 = arith.divf %166, %167 : vector<8x128xf32>
    %169 = arith.mulf %160, %139 : vector<8x128xf32>
    %170 = arith.mulf %154, %162 : vector<8x128xf32>
    %171 = arith.addf %169, %170 : vector<8x128xf32>
    %172 = math.tanh %171 : vector<8x128xf32>
    %173 = arith.mulf %168, %172 : vector<8x128xf32>
    %c5_i32 = arith.constant 5 : i32
    %c8_i32_46 = arith.constant 8 : i32
    %174 = arith.muli %c5_i32, %c8_i32_46 : i32
    %175 = tpu.assume_multiple %174, 8 : i32
    %176 = arith.index_cast %175 : i32 to index
    %c0_47 = arith.constant 0 : index
    %177 = vector.load %arg9[%176, %c0_47] : memref<64x512xf32, #tpu.memory_space<vmem>>, vector<8x512xf32>
    %178 = arith.truncf %173 : vector<8x128xf32> to vector<8x128xbf16>
    %cst_48 = arith.constant dense<0.000000e+00> : vector<8x512xf32>
    %179 = tpu.matmul %178, %11, %cst_48 {dimension_numbers = #tpu.dot_dimension_numbers<[1], [0], [0], [1], [0, 0, 1, 1], [], []>} : vector<8x128xbf16>, vector<128x512xbf16>, vector<8x512xf32> -> vector<8x512xf32>
    %180 = arith.addf %177, %179 : vector<8x512xf32>
    %181 = vector.extract_strided_slice %180 {offsets = [0, 0], sizes = [8, 128], strides = [1, 1]} : vector<8x512xf32> to vector<8x128xf32>
    %182 = arith.negf %181 : vector<8x128xf32>
    %183 = math.exp %182 : vector<8x128xf32>
    %cst_49 = arith.constant 1.000000e+00 : f32
    %184 = vector.broadcast %cst_49 : f32 to vector<8x128xf32>
    %185 = arith.addf %184, %183 : vector<8x128xf32>
    %186 = arith.divf %184, %185 : vector<8x128xf32>
    %187 = vector.extract_strided_slice %180 {offsets = [0, 128], sizes = [8, 128], strides = [1, 1]} : vector<8x512xf32> to vector<8x128xf32>
    %188 = arith.negf %187 : vector<8x128xf32>
    %189 = math.exp %188 : vector<8x128xf32>
    %cst_50 = arith.constant 1.000000e+00 : f32
    %190 = vector.broadcast %cst_50 : f32 to vector<8x128xf32>
    %191 = arith.addf %190, %189 : vector<8x128xf32>
    %192 = arith.divf %190, %191 : vector<8x128xf32>
    %193 = vector.extract_strided_slice %180 {offsets = [0, 256], sizes = [8, 128], strides = [1, 1]} : vector<8x512xf32> to vector<8x128xf32>
    %194 = math.tanh %193 : vector<8x128xf32>
    %195 = vector.extract_strided_slice %180 {offsets = [0, 384], sizes = [8, 128], strides = [1, 1]} : vector<8x512xf32> to vector<8x128xf32>
    %196 = arith.negf %195 : vector<8x128xf32>
    %197 = math.exp %196 : vector<8x128xf32>
    %cst_51 = arith.constant 1.000000e+00 : f32
    %198 = vector.broadcast %cst_51 : f32 to vector<8x128xf32>
    %199 = arith.addf %198, %197 : vector<8x128xf32>
    %200 = arith.divf %198, %199 : vector<8x128xf32>
    %201 = arith.mulf %192, %171 : vector<8x128xf32>
    %202 = arith.mulf %186, %194 : vector<8x128xf32>
    %203 = arith.addf %201, %202 : vector<8x128xf32>
    %204 = math.tanh %203 : vector<8x128xf32>
    %205 = arith.mulf %200, %204 : vector<8x128xf32>
    %c6_i32 = arith.constant 6 : i32
    %c8_i32_52 = arith.constant 8 : i32
    %206 = arith.muli %c6_i32, %c8_i32_52 : i32
    %207 = tpu.assume_multiple %206, 8 : i32
    %208 = arith.index_cast %207 : i32 to index
    %c0_53 = arith.constant 0 : index
    %209 = vector.load %arg9[%208, %c0_53] : memref<64x512xf32, #tpu.memory_space<vmem>>, vector<8x512xf32>
    %210 = arith.truncf %205 : vector<8x128xf32> to vector<8x128xbf16>
    %cst_54 = arith.constant dense<0.000000e+00> : vector<8x512xf32>
    %211 = tpu.matmul %210, %11, %cst_54 {dimension_numbers = #tpu.dot_dimension_numbers<[1], [0], [0], [1], [0, 0, 1, 1], [], []>} : vector<8x128xbf16>, vector<128x512xbf16>, vector<8x512xf32> -> vector<8x512xf32>
    %212 = arith.addf %209, %211 : vector<8x512xf32>
    %213 = vector.extract_strided_slice %212 {offsets = [0, 0], sizes = [8, 128], strides = [1, 1]} : vector<8x512xf32> to vector<8x128xf32>
    %214 = arith.negf %213 : vector<8x128xf32>
    %215 = math.exp %214 : vector<8x128xf32>
    %cst_55 = arith.constant 1.000000e+00 : f32
    %216 = vector.broadcast %cst_55 : f32 to vector<8x128xf32>
    %217 = arith.addf %216, %215 : vector<8x128xf32>
    %218 = arith.divf %216, %217 : vector<8x128xf32>
    %219 = vector.extract_strided_slice %212 {offsets = [0, 128], sizes = [8, 128], strides = [1, 1]} : vector<8x512xf32> to vector<8x128xf32>
    %220 = arith.negf %219 : vector<8x128xf32>
    %221 = math.exp %220 : vector<8x128xf32>
    %cst_56 = arith.constant 1.000000e+00 : f32
    %222 = vector.broadcast %cst_56 : f32 to vector<8x128xf32>
    %223 = arith.addf %222, %221 : vector<8x128xf32>
    %224 = arith.divf %222, %223 : vector<8x128xf32>
    %225 = vector.extract_strided_slice %212 {offsets = [0, 256], sizes = [8, 128], strides = [1, 1]} : vector<8x512xf32> to vector<8x128xf32>
    %226 = math.tanh %225 : vector<8x128xf32>
    %227 = vector.extract_strided_slice %212 {offsets = [0, 384], sizes = [8, 128], strides = [1, 1]} : vector<8x512xf32> to vector<8x128xf32>
    %228 = arith.negf %227 : vector<8x128xf32>
    %229 = math.exp %228 : vector<8x128xf32>
    %cst_57 = arith.constant 1.000000e+00 : f32
    %230 = vector.broadcast %cst_57 : f32 to vector<8x128xf32>
    %231 = arith.addf %230, %229 : vector<8x128xf32>
    %232 = arith.divf %230, %231 : vector<8x128xf32>
    %233 = arith.mulf %224, %203 : vector<8x128xf32>
    %234 = arith.mulf %218, %226 : vector<8x128xf32>
    %235 = arith.addf %233, %234 : vector<8x128xf32>
    %236 = math.tanh %235 : vector<8x128xf32>
    %237 = arith.mulf %232, %236 : vector<8x128xf32>
    %c7_i32 = arith.constant 7 : i32
    %c8_i32_58 = arith.constant 8 : i32
    %238 = arith.muli %c7_i32, %c8_i32_58 : i32
    %239 = tpu.assume_multiple %238, 8 : i32
    %240 = arith.index_cast %239 : i32 to index
    %c0_59 = arith.constant 0 : index
    %241 = vector.load %arg9[%240, %c0_59] : memref<64x512xf32, #tpu.memory_space<vmem>>, vector<8x512xf32>
    %242 = arith.truncf %237 : vector<8x128xf32> to vector<8x128xbf16>
    %cst_60 = arith.constant dense<0.000000e+00> : vector<8x512xf32>
    %243 = tpu.matmul %242, %11, %cst_60 {dimension_numbers = #tpu.dot_dimension_numbers<[1], [0], [0], [1], [0, 0, 1, 1], [], []>} : vector<8x128xbf16>, vector<128x512xbf16>, vector<8x512xf32> -> vector<8x512xf32>
    %244 = arith.addf %241, %243 : vector<8x512xf32>
    %245 = vector.extract_strided_slice %244 {offsets = [0, 0], sizes = [8, 128], strides = [1, 1]} : vector<8x512xf32> to vector<8x128xf32>
    %246 = arith.negf %245 : vector<8x128xf32>
    %247 = math.exp %246 : vector<8x128xf32>
    %cst_61 = arith.constant 1.000000e+00 : f32
    %248 = vector.broadcast %cst_61 : f32 to vector<8x128xf32>
    %249 = arith.addf %248, %247 : vector<8x128xf32>
    %250 = arith.divf %248, %249 : vector<8x128xf32>
    %251 = vector.extract_strided_slice %244 {offsets = [0, 128], sizes = [8, 128], strides = [1, 1]} : vector<8x512xf32> to vector<8x128xf32>
    %252 = arith.negf %251 : vector<8x128xf32>
    %253 = math.exp %252 : vector<8x128xf32>
    %cst_62 = arith.constant 1.000000e+00 : f32
    %254 = vector.broadcast %cst_62 : f32 to vector<8x128xf32>
    %255 = arith.addf %254, %253 : vector<8x128xf32>
    %256 = arith.divf %254, %255 : vector<8x128xf32>
    %257 = vector.extract_strided_slice %244 {offsets = [0, 256], sizes = [8, 128], strides = [1, 1]} : vector<8x512xf32> to vector<8x128xf32>
    %258 = math.tanh %257 : vector<8x128xf32>
    %259 = vector.extract_strided_slice %244 {offsets = [0, 384], sizes = [8, 128], strides = [1, 1]} : vector<8x512xf32> to vector<8x128xf32>
    %260 = arith.negf %259 : vector<8x128xf32>
    %261 = math.exp %260 : vector<8x128xf32>
    %cst_63 = arith.constant 1.000000e+00 : f32
    %262 = vector.broadcast %cst_63 : f32 to vector<8x128xf32>
    %263 = arith.addf %262, %261 : vector<8x128xf32>
    %264 = arith.divf %262, %263 : vector<8x128xf32>
    %265 = arith.mulf %256, %235 : vector<8x128xf32>
    %266 = arith.mulf %250, %258 : vector<8x128xf32>
    %267 = arith.addf %265, %266 : vector<8x128xf32>
    %268 = math.tanh %267 : vector<8x128xf32>
    %269 = arith.mulf %264, %268 : vector<8x128xf32>
    %c8_i32_64 = arith.constant 8 : i32
    %c0_65 = arith.constant 0 : index
    %c0_66 = arith.constant 0 : index
    %270 = vector.load %arg10[%c0_65, %c0_66] : memref<8x128xf32, #tpu.memory_space<vmem>>, vector<8x128xf32>
    tpu.vector_store %arg10[%c0_65, %c0_66], %269 {strides = array<i32>} : memref<8x128xf32, #tpu.memory_space<vmem>>, vector<8x128xf32>,
    %c0_67 = arith.constant 0 : index
    %c0_68 = arith.constant 0 : index
    %271 = vector.load %arg11[%c0_67, %c0_68] : memref<8x128xf32, #tpu.memory_space<vmem>>, vector<8x128xf32>
    tpu.vector_store %arg11[%c0_67, %c0_68], %267 {strides = array<i32>} : memref<8x128xf32, #tpu.memory_space<vmem>>, vector<8x128xf32>,
    %c0_i32_69 = arith.constant 0 : i32
    %272 = arith.cmpi eq, %arg1, %c0_i32_69 : i32
    %273 = arith.extui %272 : i1 to i32
    %c0_i32_70 = arith.constant 0 : i32
    %274 = arith.cmpi ne, %273, %c0_i32_70 : i32
    scf.if %274 {
      %c0_71 = arith.constant 0 : index
      %c0_72 = arith.constant 0 : index
      %275 = vector.load %arg10[%c0_71, %c0_72] : memref<8x128xf32, #tpu.memory_space<vmem>>, vector<8x128xf32>
      %c0_73 = arith.constant 0 : index
      %c0_74 = arith.constant 0 : index
      %276 = vector.load %arg6[%c0_73, %c0_74] : memref<1x128xf32, #tpu.memory_space<vmem>>, vector<1x128xf32>
      %277 = vector.broadcast %276 : vector<1x128xf32> to vector<8x128xf32>
      %278 = arith.mulf %275, %277 : vector<8x128xf32>
      %cst_75 = arith.constant dense<0.000000e+00> : vector<8xf32>
      %279 = vector.multi_reduction <add>, %278, %cst_75 [1] : vector<8x128xf32> to vector<8xf32>
      %280 = vector.shape_cast %279 : vector<8xf32> to vector<8x1xf32>
      %c0_76 = arith.constant 0 : index
      %c0_77 = arith.constant 0 : index
      %281 = vector.load %arg7[%c0_76, %c0_77] : memref<1x1xf32, #tpu.memory_space<vmem>>, vector<1x1xf32>
      %282 = vector.broadcast %281 : vector<1x1xf32> to vector<8x1xf32>
      %283 = arith.addf %280, %282 : vector<8x1xf32>
      %284 = arith.negf %283 : vector<8x1xf32>
      %285 = math.exp %284 : vector<8x1xf32>
      %cst_78 = arith.constant 1.000000e+00 : f32
      %286 = vector.broadcast %cst_78 : f32 to vector<8x1xf32>
      %287 = arith.addf %286, %285 : vector<8x1xf32>
      %288 = arith.divf %286, %287 : vector<8x1xf32>
      %c0_79 = arith.constant 0 : index
      %c0_80 = arith.constant 0 : index
      %289 = vector.load %arg8[%c0_79, %c0_80] : memref<8x1xf32, #tpu.memory_space<vmem>>, vector<8x1xf32>
      tpu.vector_store %arg8[%c0_79, %c0_80], %288 {strides = array<i32>} : memref<8x1xf32, #tpu.memory_space<vmem>>, vector<8x1xf32>,
    } else {
    }
    return
  }
  func.func @transform_0(%arg0: i32, %arg1: i32) -> (i32, i32, i32, i32) {
    %c0_i32 = arith.constant 0 : i32
    %c0_i32_0 = arith.constant 0 : i32
    %c0_i32_1 = arith.constant 0 : i32
    return %arg0, %arg1, %c0_i32, %c0_i32_0 : i32, i32, i32, i32
  }
  func.func @transform_1(%arg0: i32, %arg1: i32) -> (i32, i32) {
    %c0_i32 = arith.constant 0 : i32
    %c0_i32_0 = arith.constant 0 : i32
    %c0_i32_1 = arith.constant 0 : i32
    return %c0_i32, %c0_i32_0 : i32, i32
  }
  func.func @transform_2(%arg0: i32, %arg1: i32) -> (i32, i32) {
    %c0_i32 = arith.constant 0 : i32
    %c0_i32_0 = arith.constant 0 : i32
    %c0_i32_1 = arith.constant 0 : i32
    return %c0_i32, %c0_i32_0 : i32, i32
  }
  func.func @transform_3(%arg0: i32, %arg1: i32) -> (i32, i32) {
    %c0_i32 = arith.constant 0 : i32
    %c0_i32_0 = arith.constant 0 : i32
    %c0_i32_1 = arith.constant 0 : i32
    return %c0_i32, %c0_i32_0 : i32, i32
  }
  func.func @transform_4(%arg0: i32, %arg1: i32) -> (i32, i32) {
    %c0_i32 = arith.constant 0 : i32
    %c0_i32_0 = arith.constant 0 : i32
    %c0_i32_1 = arith.constant 0 : i32
    return %c0_i32, %c0_i32_0 : i32, i32
  }
  func.func @transform_5(%arg0: i32, %arg1: i32) -> (i32, i32) {
    %c0_i32 = arith.constant 0 : i32
    %c0_i32_0 = arith.constant 0 : i32
    %c0_i32_1 = arith.constant 0 : i32
    return %c0_i32, %c0_i32_0 : i32, i32
  }
  func.func @transform_6(%arg0: i32, %arg1: i32) -> (i32, i32) {
    %c0_i32 = arith.constant 0 : i32
    %c0_i32_0 = arith.constant 0 : i32
    return %arg0, %c0_i32 : i32, i32
  }
}

</mosaic_0001>

<llo_original>
// kernel: tpu_custom_call.1
$region0: #{tpu_custom_call.1}
  #allocation0 [shape = 'u32[]', space=smem, size = 0x4, offset = 0x4, fixed_abs, tag = 'smem constant byte address 0x4 - core index']
  #allocation1 [shape = 'u32[144,128]{1,0:T(1,128)}', space=vmem, size = 0x12000, scoped, tag = 'internal scratch']
  #allocation2 [shape = 'f32[64,512]{1,0:T(8,128)}', space=vmem, size = 0x20000, scoped, tag = 'scratch operand']
  #allocation3 [shape = 'f32[8,128]{1,0:T(8,128)}', space=vmem, size = 0x1000, scoped, tag = 'scratch operand']
  #allocation4 [shape = 'f32[8,128]{1,0:T(8,128)}', space=vmem, size = 0x1000, scoped, tag = 'scratch operand']
  #allocation5 [shape = 'f32[1,1]{1,0:T(1,128)S(1)}', space=vmem, size = 0x200, scoped, tag = 'scoped memory for tpu_custom_call.1']
  %s0 = inlined_call_operand.vmem [shape: bf16[1,1,64,16], index: 0, kind: input, shape index: {}]
  %s1 = inlined_call_operand.vmem [shape: bf16[16,512], index: 1, kind: input, shape index: {}]
  %s2 = inlined_call_operand.hbm [shape: bf16[128,512], index: 2, kind: input, shape index: {}]
  %s3 = inlined_call_operand.vmem [shape: f32[1,512], index: 3, kind: input, shape index: {}]
  %s4 = inlined_call_operand.vmem [shape: f32[1,128], index: 4, kind: input, shape index: {}]
  %s5 = inlined_call_operand.<no memory space> [shape: f32[1,1], index: 5, kind: input, shape index: {}]
  %s6 = inlined_call_operand.vmem [shape: f32[8,1], index: 6, kind: output, shape index: {}]
  %s7 = sld [smem:[#allocation0]]
  $region46: #{tpu_custom_call.1} parent=0
    _
  %s9 = ssub.s32 1, %s7
  %s10 = scalar_select 0, %s9, %s7
  %v11 = vstv %s5
  %12 = vst [vmem:[#allocation5] sm:$0x1] %v11
  $region1: #{tpu_custom_call.1} parent=0
    #allocation6 [shape = 'u8[131072]{0}', space=vmem, size = 0x20000, scoped, tag = 'input window, operand 2, single buffered']
    #allocation7 [shape = 's32[1]{0}', space=sflag, size = 0x4, scoped, tag = 'scoped memory for tpu_custom_call.1']
    %13 = vsyncpa [#allocation7], 0
    // Predicated region
    $region2: #{tpu_custom_call.1} parent=1 // pred_check
      _
    $region3: #{tpu_custom_call.1} parent=1 // pred_check_branch
      %15 = sbr.rel (0) target = $region5
    $region4: #{tpu_custom_call.1} parent=1 // pred_region
      _
    $region5: #{tpu_custom_call.1} parent=1 // pred_fallthru
      _
    // Predicated region
    $region6: #{tpu_custom_call.1} parent=1 // pred_check
      _
    $region7: #{tpu_custom_call.1} parent=1 // pred_check_branch
      %17 = sbr.rel (0) target = $region9
    $region8: #{tpu_custom_call.1} parent=1 // pred_region
      _
    $region9: #{tpu_custom_call.1} parent=1 // pred_fallthru
      _
    // Predicated region
    $region10: #{tpu_custom_call.1} parent=1 // pred_check
      _
    $region11: #{tpu_custom_call.1} parent=1 // pred_check_branch
      %19 = sbr.rel (0) target = $region13
    $region12: #{tpu_custom_call.1} parent=1 // pred_region
      %s21 = ssub.s32 4096, 4096
      %22 = vsyncadd [#allocation7], %s21
      %s23 = sshll.u32 [#allocation6], 4
      %s24 = int_to_ptr.vmem [resolvable:$true] %s23
      %29 = dma.hbm_to_vmem [thread:$0]  %s2, 4096, %s24, [#allocation7], 256, 256, 16
    $region13: #{tpu_custom_call.1} parent=1 // pred_fallthru
      _
    // Predicated region
    $region14: #{tpu_custom_call.1} parent=1 // pred_check
      _
    $region15: #{tpu_custom_call.1} parent=1 // pred_check_branch
      %31 = sbr.rel (0) target = $region17
    $region16: #{tpu_custom_call.1} parent=1 // pred_region
      _
    $region17: #{tpu_custom_call.1} parent=1 // pred_fallthru
      _
    // Predicated region
    $region18: #{tpu_custom_call.1} parent=1 // pred_check
      _
    $region19: #{tpu_custom_call.1} parent=1 // pred_check_branch
      %33 = sbr.rel (0) target = $region21
    $region20: #{tpu_custom_call.1} parent=1 // pred_region
      _
    $region21: #{tpu_custom_call.1} parent=1 // pred_fallthru
      _
    // Predicated region
    $region22: #{tpu_custom_call.1} parent=1 // pred_check
      _
    $region23: #{tpu_custom_call.1} parent=1 // pred_check_branch
      %35 = sbr.rel (0) target = $region25
    $region24: #{tpu_custom_call.1} parent=1 // pred_region
      _
    $region25: #{tpu_custom_call.1} parent=1 // pred_fallthru
      _
    // Predicated region
    $region26: #{tpu_custom_call.1} parent=1 // pred_check
      _
    $region27: #{tpu_custom_call.1} parent=1 // pred_check_branch
      %37 = sbr.rel (0) target = $region29
    $region28: #{tpu_custom_call.1} parent=1 // pred_region
      %38 = dma.done [#allocation7], 4096
    $region29: #{tpu_custom_call.1} parent=1 // pred_fallthru
      _
    %p40 = scmp.eq.s32.totalorder 0, 0
    // Predicated region
    $region30: #{tpu_custom_call.1} parent=1 // pred_check
      %p41 = pneg %p40
    $region31: #{tpu_custom_call.1} parent=1 // pred_check_branch
      %43 = sbr.rel (%p41) target = $region33
    $region32: #{tpu_custom_call.1} parent=1 // pred_region
      %44 = vst [vmem:[#allocation3] sm:$0xff] 0.0
      %45 = vst [vmem:[#allocation4] sm:$0xff] 0.0
    $region33: #{tpu_custom_call.1} parent=1 // pred_fallthru
      _
    %v46 = vld [vmem:[%s0] sm:$0xf]
    %v47 = vld [vmem:[%s0 + $0x4] sm:$0xf]
    %v48 = vld [vmem:[%s0 + $0x8] sm:$0xf]
    %v49 = vld [vmem:[%s0 + $0xc] sm:$0xf]
    %v50 = vld [vmem:[%s0 + $0x10] sm:$0xf]
    %v51 = vld [vmem:[%s0 + $0x14] sm:$0xf]
    %v52 = vld [vmem:[%s0 + $0x18] sm:$0xf]
    %v53 = vld [vmem:[%s0 + $0x1c] sm:$0xf]
    %v54 = vld [vmem:[%s1] sm:$0xff]
    %v55 = vld [vmem:[%s1 + $0x8] sm:$0xff]
    %v56 = vld [vmem:[%s1 + $0x10] sm:$0xff]
    %v57 = vld [vmem:[%s1 + $0x18] sm:$0xff]
    %v58 = vld [vmem:[%s3] sm:$0xf]
    %v60 = vlaneseq
    %v61 = vshrl.u32 %v60, 7
    %v62 = vsub.s32 0, %v61
    %v63 = vrot.slane %v58, %v62
    %v64 = vlaneseq
    %v65 = vshrl.u32 %v64, 7
    %v66 = vsub.s32 1, %v65
    %v67 = vrot.slane %v58, %v66
    %v68 = vlaneseq
    %v69 = vshrl.u32 %v68, 7
    %v70 = vsub.s32 2, %v69
    %v71 = vrot.slane %v58, %v70
    %v72 = vlaneseq
    %v73 = vshrl.u32 %v72, 7
    %v74 = vsub.s32 3, %v73
    %v75 = vrot.slane %v58, %v74
    %v88 = vunpack.c.l.b16 %v46
    %v89 = vunpack.c.l.b16 %v47
    %v90 = vunpack.c.l.b16 %v48
    %v91 = vunpack.c.l.b16 %v49
    %v92 = vunpack.c.l.b16 %v50
    %v93 = vunpack.c.l.b16 %v51
    %v94 = vunpack.c.l.b16 %v52
    %v95 = vunpack.c.l.b16 %v53
    %v96 = vpack.c.b16 %v89, %v88
    %v97 = vpack.c.b16 %v91, %v90
    %v98 = vpack.c.b16 %v93, %v92
    %v99 = vpack.c.b16 %v95, %v94
    %v104 = vunpack.c.l.b16 %v54
    %v105 = vunpack.c.h.b16 %v54
    %v106 = vunpack.c.l.b16 %v55
    %v107 = vunpack.c.h.b16 %v55
    %v108 = vunpack.c.l.b16 %v56
    %v109 = vunpack.c.h.b16 %v56
    %v110 = vunpack.c.l.b16 %v57
    %v111 = vunpack.c.h.b16 %v57
    %v112 = vpack.c.b16 %v108, %v104
    %v113 = vpack.c.b16 %v109, %v105
    %v114 = vpack.c.b16 %v110, %v106
    %v115 = vpack.c.b16 %v111, %v107
    %vm120 = vcmask 130048
    %v122 = vsel %vm120, %v96, 0
    %v125 = vsel %vm120, %v97, 0
    %v128 = vsel %vm120, %v98, 0
    %v131 = vsel %vm120, %v99, 0
    %133 = vmatprep.subr.bf16.mxu0 0
    %134 = vmatpush1.bf16.msra.mxu0 0
    %135 = vmatprep.subr.bf16.mxu0 0
    %136 = vmatpush1.bf16.msra.mxu0 0
    %137 = vmatprep.subr.bf16.mxu0 0
    %138 = vmatpush1.bf16.msra.mxu0 0
    %139 = vmatprep.subr.bf16.mxu0 0
    %140 = vmatpush1.bf16.msra.mxu0 0
    %141 = vmatprep.subr.bf16.mxu0 0
    %142 = vmatpush1.bf16.msra.mxu0 0
    %143 = vmatprep.subr.bf16.mxu0 0
    %144 = vmatpush1.bf16.msra.mxu0 0
    %145 = vmatprep.subr.bf16.mxu0 0
    %146 = vmatpush1.bf16.msra.mxu0 0
    %147 = vmatprep.subr.bf16.mxu0 %v113
    %148 = vmatpush1.bf16.msra.mxu0 %v112
    %149 = vmatprep.subr.bf16.mxu0 0
    %150 = vmatpush2.bf16.msra.mxu0 0
    %151 = vmatprep.subr.bf16.mxu0 0
    %152 = vmatpush2.bf16.msra.mxu0 0
    %153 = vmatprep.subr.bf16.mxu0 0
    %154 = vmatpush2.bf16.msra.mxu0 0
    %155 = vmatprep.subr.bf16.mxu0 0
    %156 = vmatpush2.bf16.msra.mxu0 0
    %157 = vmatprep.subr.bf16.mxu0 0
    %158 = vmatpush2.bf16.msra.mxu0 0
    %159 = vmatprep.subr.bf16.mxu0 0
    %160 = vmatpush2.bf16.msra.mxu0 0
    %161 = vmatprep.subr.bf16.mxu0 0
    %162 = vmatpush2.bf16.msra.mxu0 0
    %163 = vmatprep.subr.bf16.mxu0 0
    %164 = vmatpush2.bf16.msra.mxu0 0
    %165 = vmatprep.mubr.bf16.mxu0 0
    %166 = vmatmul.mubr.bf16.gmra.mxu0 %v122
    %v167 = vpop.f32.mrf.mxu0
    %v168 = vadd.f32 %v63, %v167
    %v169 = vpop.f32.mrf.mxu0
    %v170 = vadd.f32 %v67, %v169
    %v171 = vpop.f32.mrf.mxu0
    %v172 = vadd.f32 %v63, %v171
    %v173 = vpop.f32.mrf.mxu0
    %v174 = vadd.f32 %v67, %v173
    %175 = vmatprep.mubr.bf16.mxu0 0
    %176 = vmatmul.mubr.bf16.gmra.mxu0 %v125
    %v177 = vpop.f32.mrf.mxu0
    %v178 = vadd.f32 %v63, %v177
    %v179 = vpop.f32.mrf.mxu0
    %v180 = vadd.f32 %v67, %v179
    %v181 = vpop.f32.mrf.mxu0
    %v182 = vadd.f32 %v63, %v181
    %v183 = vpop.f32.mrf.mxu0
    %v184 = vadd.f32 %v67, %v183
    %185 = vmatprep.mubr.bf16.mxu0 0
    %186 = vmatmul.mubr.bf16.gmra.mxu0 %v128
    %v187 = vpop.f32.mrf.mxu0
    %v188 = vadd.f32 %v63, %v187
    %v189 = vpop.f32.mrf.mxu0
    %v190 = vadd.f32 %v67, %v189
    %v191 = vpop.f32.mrf.mxu0
    %v192 = vadd.f32 %v63, %v191
    %v193 = vpop.f32.mrf.mxu0
    %v194 = vadd.f32 %v67, %v193
    %195 = vmatprep.mubr.bf16.mxu0 0
    %196 = vmatmul.mubr.bf16.gmra.mxu0 %v131
    %v197 = vpop.f32.mrf.mxu0
    %v198 = vadd.f32 %v63, %v197
    %v199 = vpop.f32.mrf.mxu0
    %v200 = vadd.f32 %v67, %v199
    %v201 = vpop.f32.mrf.mxu0
    %v202 = vadd.f32 %v63, %v201
    %v203 = vpop.f32.mrf.mxu0
    %v204 = vadd.f32 %v67, %v203
    %205 = vdwg.mxu0
    %206 = vmatprep.subr.bf16.mxu0 0
    %207 = vmatpush1.bf16.msra.mxu0 0
    %208 = vmatprep.subr.bf16.mxu0 0
    %209 = vmatpush1.bf16.msra.mxu0 0
    %210 = vmatprep.subr.bf16.mxu0 0
    %211 = vmatpush1.bf16.msra.mxu0 0
    %212 = vmatprep.subr.bf16.mxu0 0
    %213 = vmatpush1.bf16.msra.mxu0 0
    %214 = vmatprep.subr.bf16.mxu0 0
    %215 = vmatpush1.bf16.msra.mxu0 0
    %216 = vmatprep.subr.bf16.mxu0 0
    %217 = vmatpush1.bf16.msra.mxu0 0
    %218 = vmatprep.subr.bf16.mxu0 0
    %219 = vmatpush1.bf16.msra.mxu0 0
    %220 = vmatprep.subr.bf16.mxu0 %v115
    %221 = vmatpush1.bf16.msra.mxu0 %v114
    %222 = vmatprep.subr.bf16.mxu0 0
    %223 = vmatpush2.bf16.msra.mxu0 0
    %224 = vmatprep.subr.bf16.mxu0 0
    %225 = vmatpush2.bf16.msra.mxu0 0
    %226 = vmatprep.subr.bf16.mxu0 0
    %227 = vmatpush2.bf16.msra.mxu0 0
    %228 = vmatprep.subr.bf16.mxu0 0
    %229 = vmatpush2.bf16.msra.mxu0 0
    %230 = vmatprep.subr.bf16.mxu0 0
    %231 = vmatpush2.bf16.msra.mxu0 0
    %232 = vmatprep.subr.bf16.mxu0 0
    %233 = vmatpush2.bf16.msra.mxu0 0
    %234 = vmatprep.subr.bf16.mxu0 0
    %235 = vmatpush2.bf16.msra.mxu0 0
    %236 = vmatprep.subr.bf16.mxu0 0
    %237 = vmatpush2.bf16.msra.mxu0 0
    %238 = vmatprep.mubr.bf16.mxu0 0
    %239 = vmatmul.mubr.bf16.gmra.mxu0 %v122
    %v240 = vpop.f32.mrf.mxu0
    %v241 = vadd.f32 %v71, %v240
    %v242 = vpop.f32.mrf.mxu0
    %v243 = vadd.f32 %v75, %v242
    %v244 = vpop.f32.mrf.mxu0
    %v245 = vadd.f32 %v71, %v244
    %v246 = vpop.f32.mrf.mxu0
    %v247 = vadd.f32 %v75, %v246
    %248 = vmatprep.mubr.bf16.mxu0 0
    %249 = vmatmul.mubr.bf16.gmra.mxu0 %v125
    %v250 = vpop.f32.mrf.mxu0
    %v251 = vadd.f32 %v71, %v250
    %v252 = vpop.f32.mrf.mxu0
    %v253 = vadd.f32 %v75, %v252
    %v254 = vpop.f32.mrf.mxu0
    %v255 = vadd.f32 %v71, %v254
    %v256 = vpop.f32.mrf.mxu0
    %v257 = vadd.f32 %v75, %v256
    %258 = vmatprep.mubr.bf16.mxu0 0
    %259 = vmatmul.mubr.bf16.gmra.mxu0 %v128
    %v260 = vpop.f32.mrf.mxu0
    %v261 = vadd.f32 %v71, %v260
    %v262 = vpop.f32.mrf.mxu0
    %v263 = vadd.f32 %v75, %v262
    %v264 = vpop.f32.mrf.mxu0
    %v265 = vadd.f32 %v71, %v264
    %v266 = vpop.f32.mrf.mxu0
    %v267 = vadd.f32 %v75, %v266
    %268 = vmatprep.mubr.bf16.mxu0 0
    %269 = vmatmul.mubr.bf16.gmra.mxu0 %v131
    %v270 = vpop.f32.mrf.mxu0
    %v271 = vadd.f32 %v71, %v270
    %v272 = vpop.f32.mrf.mxu0
    %v273 = vadd.f32 %v75, %v272
    %v274 = vpop.f32.mrf.mxu0
    %v275 = vadd.f32 %v71, %v274
    %v276 = vpop.f32.mrf.mxu0
    %v277 = vadd.f32 %v75, %v276
    %278 = vdwg.mxu0
    %279 = vst [vmem:[#allocation2] sm:$0xff] %v168
    %280 = vst [vmem:[#allocation2 + $0x8] sm:$0xff] %v170
    %281 = vst [vmem:[#allocation2 + $0x10] sm:$0xff] %v241
    %282 = vst [vmem:[#allocation2 + $0x18] sm:$0xff] %v243
    %283 = vst [vmem:[#allocation2 + $0x20] sm:$0xff] %v172
    %284 = vst [vmem:[#allocation2 + $0x28] sm:$0xff] %v174
    %285 = vst [vmem:[#allocation2 + $0x30] sm:$0xff] %v245
    %286 = vst [vmem:[#allocation2 + $0x38] sm:$0xff] %v247
    %287 = vst [vmem:[#allocation2 + $0x40] sm:$0xff] %v178
    %288 = vst [vmem:[#allocation2 + $0x48] sm:$0xff] %v180
    %289 = vst [vmem:[#allocation2 + $0x50] sm:$0xff] %v251
    %290 = vst [vmem:[#allocation2 + $0x58] sm:$0xff] %v253
    %291 = vst [vmem:[#allocation2 + $0x60] sm:$0xff] %v182
    %292 = vst [vmem:[#allocation2 + $0x68] sm:$0xff] %v184
    %293 = vst [vmem:[#allocation2 + $0x70] sm:$0xff] %v255
    %294 = vst [vmem:[#allocation2 + $0x78] sm:$0xff] %v257
    %295 = vst [vmem:[#allocation2 + $0x80] sm:$0xff] %v188
    %296 = vst [vmem:[#allocation2 + $0x88] sm:$0xff] %v190
    %297 = vst [vmem:[#allocation2 + $0x90] sm:$0xff] %v261
    %298 = vst [vmem:[#allocation2 + $0x98] sm:$0xff] %v263
    %299 = vst [vmem:[#allocation2 + $0xa0] sm:$0xff] %v192
    %300 = vst [vmem:[#allocation2 + $0xa8] sm:$0xff] %v194
    %301 = vst [vmem:[#allocation2 + $0xb0] sm:$0xff] %v265
    %302 = vst [vmem:[#allocation2 + $0xb8] sm:$0xff] %v267
    %303 = vst [vmem:[#allocation2 + $0xc0] sm:$0xff] %v198
    %304 = vst [vmem:[#allocation2 + $0xc8] sm:$0xff] %v200
    %305 = vst [vmem:[#allocation2 + $0xd0] sm:$0xff] %v271
    %306 = vst [vmem:[#allocation2 + $0xd8] sm:$0xff] %v273
    %307 = vst [vmem:[#allocation2 + $0xe0] sm:$0xff] %v202
    %308 = vst [vmem:[#allocation2 + $0xe8] sm:$0xff] %v204
    %309 = vst [vmem:[#allocation2 + $0xf0] sm:$0xff] %v275
    %310 = vst [vmem:[#allocation2 + $0xf8] sm:$0xff] %v277
    %v311 = vld [vmem:[#allocation6] sm:$0xff]
    %v312 = vld [vmem:[#allocation6 + $0x8] sm:$0xff]
    %v313 = vld [vmem:[#allocation6 + $0x10] sm:$0xff]
    %v314 = vld [vmem:[#allocation6 + $0x18] sm:$0xff]
    %v315 = vld [vmem:[#allocation6 + $0x20] sm:$0xff]
    %v316 = vld [vmem:[#allocation6 + $0x28] sm:$0xff]
    %v317 = vld [vmem:[#allocation6 + $0x30] sm:$0xff]
    %v318 = vld [vmem:[#allocation6 + $0x38] sm:$0xff]
    %v319 = vld [vmem:[#allocation6 + $0x40] sm:$0xff]
    %v320 = vld [vmem:[#allocation6 + $0x48] sm:$0xff]
    %v321 = vld [vmem:[#allocation6 + $0x50] sm:$0xff]
    %v322 = vld [vmem:[#allocation6 + $0x58] sm:$0xff]
    %v323 = vld [vmem:[#allocation6 + $0x60] sm:$0xff]
    %v324 = vld [vmem:[#allocation6 + $0x68] sm:$0xff]
    %v325 = vld [vmem:[#allocation6 + $0x70] sm:$0xff]
    %v326 = vld [vmem:[#allocation6 + $0x78] sm:$0xff]
    %v327 = vld [vmem:[#allocation6 + $0x80] sm:$0xff]
    %v328 = vld [vmem:[#allocation6 + $0x88] sm:$0xff]
    %v329 = vld [vmem:[#allocation6 + $0x90] sm:$0xff]
    %v330 = vld [vmem:[#allocation6 + $0x98] sm:$0xff]
    %v331 = vld [vmem:[#allocation6 + $0xa0] sm:$0xff]
    %v332 = vld [vmem:[#allocation6 + $0xa8] sm:$0xff]
    %v333 = vld [vmem:[#allocation6 + $0xb0] sm:$0xff]
    %v334 = vld [vmem:[#allocation6 + $0xb8] sm:$0xff]
    %v335 = vld [vmem:[#allocation6 + $0xc0] sm:$0xff]
    %v336 = vld [vmem:[#allocation6 + $0xc8] sm:$0xff]
    %v337 = vld [vmem:[#allocation6 + $0xd0] sm:$0xff]
    %v338 = vld [vmem:[#allocation6 + $0xd8] sm:$0xff]
    %v339 = vld [vmem:[#allocation6 + $0xe0] sm:$0xff]
    %v340 = vld [vmem:[#allocation6 + $0xe8] sm:$0xff]
    %v341 = vld [vmem:[#allocation6 + $0xf0] sm:$0xff]
    %v342 = vld [vmem:[#allocation6 + $0xf8] sm:$0xff]
    %v343 = vld [vmem:[#allocation3] sm:$0xff]
    %v344 = vld [vmem:[#allocation4] sm:$0xff]
    %s345 = smul.u32 0, 4
    %s346 = smul.addr %s345, 8
    %s347 = scalar_lea.vmem [#allocation2], %s346
    %v348 = vld [vmem:[%s347] sm:$0xff]
    %v349 = vld [vmem:[%s347 + $0x8] sm:$0xff]
    %v350 = vld [vmem:[%s347 + $0x10] sm:$0xff]
    %v351 = vld [vmem:[%s347 + $0x18] sm:$0xff]
    %v352 = vpack.c.bf16 %v343, %v343
    %v385 = vunpack.c.l.b16 %v311
    %v386 = vunpack.c.h.b16 %v311
    %v387 = vunpack.c.l.b16 %v312
    %v388 = vunpack.c.h.b16 %v312
    %v389 = vunpack.c.l.b16 %v313
    %v390 = vunpack.c.h.b16 %v313
    %v391 = vunpack.c.l.b16 %v314
    %v392 = vunpack.c.h.b16 %v314
    %v393 = vunpack.c.l.b16 %v315
    %v394 = vunpack.c.h.b16 %v315
    %v395 = vunpack.c.l.b16 %v316
    %v396 = vunpack.c.h.b16 %v316
    %v397 = vunpack.c.l.b16 %v317
    %v398 = vunpack.c.h.b16 %v317
    %v399 = vunpack.c.l.b16 %v318
    %v400 = vunpack.c.h.b16 %v318
    %v401 = vunpack.c.l.b16 %v319
    %v402 = vunpack.c.h.b16 %v319
    %v403 = vunpack.c.l.b16 %v320
    %v404 = vunpack.c.h.b16 %v320
    %v405 = vunpack.c.l.b16 %v321
    %v406 = vunpack.c.h.b16 %v321
    %v407 = vunpack.c.l.b16 %v322
    %v408 = vunpack.c.h.b16 %v322
    %v409 = vunpack.c.l.b16 %v323
    %v410 = vunpack.c.h.b16 %v323
    %v411 = vunpack.c.l.b16 %v324
    %v412 = vunpack.c.h.b16 %v324
    %v413 = vunpack.c.l.b16 %v325
    %v414 = vunpack.c.h.b16 %v325
    %v415 = vunpack.c.l.b16 %v326
    %v416 = vunpack.c.h.b16 %v326
    %v417 = vunpack.c.l.b16 %v327
    %v418 = vunpack.c.h.b16 %v327
    %v419 = vunpack.c.l.b16 %v328
    %v420 = vunpack.c.h.b16 %v328
    %v421 = vunpack.c.l.b16 %v329
    %v422 = vunpack.c.h.b16 %v329
    %v423 = vunpack.c.l.b16 %v330
    %v424 = vunpack.c.h.b16 %v330
    %v425 = vunpack.c.l.b16 %v331
    %v426 = vunpack.c.h.b16 %v331
    %v427 = vunpack.c.l.b16 %v332
    %v428 = vunpack.c.h.b16 %v332
    %v429 = vunpack.c.l.b16 %v333
    %v430 = vunpack.c.h.b16 %v333
    %v431 = vunpack.c.l.b16 %v334
    %v432 = vunpack.c.h.b16 %v334
    %v433 = vunpack.c.l.b16 %v335
    %v434 = vunpack.c.h.b16 %v335
    %v435 = vunpack.c.l.b16 %v336
    %v436 = vunpack.c.h.b16 %v336
    %v437 = vunpack.c.l.b16 %v337
    %v438 = vunpack.c.h.b16 %v337
    %v439 = vunpack.c.l.b16 %v338
    %v440 = vunpack.c.h.b16 %v338
    %v441 = vunpack.c.l.b16 %v339
    %v442 = vunpack.c.h.b16 %v339
    %v443 = vunpack.c.l.b16 %v340
    %v444 = vunpack.c.h.b16 %v340
    %v445 = vunpack.c.l.b16 %v341
    %v446 = vunpack.c.h.b16 %v341
    %v447 = vunpack.c.l.b16 %v342
    %v448 = vunpack.c.h.b16 %v342
    %v449 = vpack.c.b16 %v389, %v385
    %v450 = vpack.c.b16 %v390, %v386
    %v451 = vpack.c.b16 %v391, %v387
    %v452 = vpack.c.b16 %v392, %v388
    %v453 = vpack.c.b16 %v397, %v393
    %v454 = vpack.c.b16 %v398, %v394
    %v455 = vpack.c.b16 %v399, %v395
    %v456 = vpack.c.b16 %v400, %v396
    %v457 = vpack.c.b16 %v405, %v401
    %v458 = vpack.c.b16 %v406, %v402
    %v459 = vpack.c.b16 %v407, %v403
    %v460 = vpack.c.b16 %v408, %v404
    %v461 = vpack.c.b16 %v413, %v409
    %v462 = vpack.c.b16 %v414, %v410
    %v463 = vpack.c.b16 %v415, %v411
    %v464 = vpack.c.b16 %v416, %v412
    %v465 = vpack.c.b16 %v421, %v417
    %v466 = vpack.c.b16 %v422, %v418
    %v467 = vpack.c.b16 %v423, %v419
    %v468 = vpack.c.b16 %v424, %v420
    %v469 = vpack.c.b16 %v429, %v425
    %v470 = vpack.c.b16 %v430, %v426
    %v471 = vpack.c.b16 %v431, %v427
    %v472 = vpack.c.b16 %v432, %v428
    %v473 = vpack.c.b16 %v437, %v433
    %v474 = vpack.c.b16 %v438, %v434
    %v475 = vpack.c.b16 %v439, %v435
    %v476 = vpack.c.b16 %v440, %v436
    %v477 = vpack.c.b16 %v445, %v441
    %v478 = vpack.c.b16 %v446, %v442
    %v479 = vpack.c.b16 %v447, %v443
    %v480 = vpack.c.b16 %v448, %v444
    %513 = vmatprep.subr.bf16.mxu0 %v478
    %514 = vmatpush1.bf16.msra.mxu0 %v477
    %515 = vmatprep.subr.bf16.mxu0 %v474
    %516 = vmatpush1.bf16.msra.mxu0 %v473
    %517 = vmatprep.subr.bf16.mxu0 %v470
    %518 = vmatpush1.bf16.msra.mxu0 %v469
    %519 = vmatprep.subr.bf16.mxu0 %v466
    %520 = vmatpush1.bf16.msra.mxu0 %v465
    %521 = vmatprep.subr.bf16.mxu0 %v462
    %522 = vmatpush1.bf16.msra.mxu0 %v461
    %523 = vmatprep.subr.bf16.mxu0 %v458
    %524 = vmatpush1.bf16.msra.mxu0 %v457
    %525 = vmatprep.subr.bf16.mxu0 %v454
    %526 = vmatpush1.bf16.msra.mxu0 %v453
    %527 = vmatprep.subr.bf16.mxu0 %v450
    %528 = vmatpush1.bf16.msra.mxu0 %v449
    %529 = vmatprep.subr.bf16.mxu0 0
    %530 = vmatpush2.bf16.msra.mxu0 0
    %531 = vmatprep.subr.bf16.mxu0 0
    %532 = vmatpush2.bf16.msra.mxu0 0
    %533 = vmatprep.subr.bf16.mxu0 0
    %534 = vmatpush2.bf16.msra.mxu0 0
    %535 = vmatprep.subr.bf16.mxu0 0
    %536 = vmatpush2.bf16.msra.mxu0 0
    %537 = vmatprep.subr.bf16.mxu0 0
    %538 = vmatpush2.bf16.msra.mxu0 0
    %539 = vmatprep.subr.bf16.mxu0 0
    %540 = vmatpush2.bf16.msra.mxu0 0
    %541 = vmatprep.subr.bf16.mxu0 0
    %542 = vmatpush2.bf16.msra.mxu0 0
    %543 = vmatprep.subr.bf16.mxu0 0
    %544 = vmatpush2.bf16.msra.mxu0 0
    %545 = vmatprep.mubr.bf16.mxu0 0
    %546 = vmatmul.mubr.bf16.gmra.mxu0 %v352
    %v547 = vpop.f32.mrf.mxu0
    %v548 = vadd.f32 0.0, %v547
    %v549 = vpop.f32.mrf.mxu0
    %v550 = vadd.f32 0.0, %v549
    %v551 = vpop.f32.mrf.mxu0
    %v552 = vpop.f32.mrf.mxu0
    %553 = vdwg.mxu0
    %554 = vmatprep.subr.bf16.mxu0 %v480
    %555 = vmatpush1.bf16.msra.mxu0 %v479
    %556 = vmatprep.subr.bf16.mxu0 %v476
    %557 = vmatpush1.bf16.msra.mxu0 %v475
    %558 = vmatprep.subr.bf16.mxu0 %v472
    %559 = vmatpush1.bf16.msra.mxu0 %v471
    %560 = vmatprep.subr.bf16.mxu0 %v468
    %561 = vmatpush1.bf16.msra.mxu0 %v467
    %562 = vmatprep.subr.bf16.mxu0 %v464
    %563 = vmatpush1.bf16.msra.mxu0 %v463
    %564 = vmatprep.subr.bf16.mxu0 %v460
    %565 = vmatpush1.bf16.msra.mxu0 %v459
    %566 = vmatprep.subr.bf16.mxu0 %v456
    %567 = vmatpush1.bf16.msra.mxu0 %v455
    %568 = vmatprep.subr.bf16.mxu0 %v452
    %569 = vmatpush1.bf16.msra.mxu0 %v451
    %570 = vmatprep.subr.bf16.mxu0 0
    %571 = vmatpush2.bf16.msra.mxu0 0
    %572 = vmatprep.subr.bf16.mxu0 0
    %573 = vmatpush2.bf16.msra.mxu0 0
    %574 = vmatprep.subr.bf16.mxu0 0
    %575 = vmatpush2.bf16.msra.mxu0 0
    %576 = vmatprep.subr.bf16.mxu0 0
    %577 = vmatpush2.bf16.msra.mxu0 0
    %578 = vmatprep.subr.bf16.mxu0 0
    %579 = vmatpush2.bf16.msra.mxu0 0
    %580 = vmatprep.subr.bf16.mxu0 0
    %581 = vmatpush2.bf16.msra.mxu0 0
    %582 = vmatprep.subr.bf16.mxu0 0
    %583 = vmatpush2.bf16.msra.mxu0 0
    %584 = vmatprep.subr.bf16.mxu0 0
    %585 = vmatpush2.bf16.msra.mxu0 0
    %586 = vmatprep.mubr.bf16.mxu0 0
    %587 = vmatmul.mubr.bf16.gmra.mxu0 %v352
    %v588 = vpop.f32.mrf.mxu0
    %v589 = vadd.f32 0.0, %v588
    %v590 = vpop.f32.mrf.mxu0
    %v591 = vadd.f32 0.0, %v590
    %v592 = vpop.f32.mrf.mxu0
    %v593 = vpop.f32.mrf.mxu0
    %594 = vdwg.mxu0
    %v595 = vadd.f32 %v348, %v548
    %v596 = vadd.f32 %v349, %v550
    %v597 = vadd.f32 %v350, %v589
    %v598 = vadd.f32 %v351, %v591
    %v599 = vxor.u32 %v595, 2147483648
    %v600 = vmul.f32 %v599, 1.442695
    %v601 = vpow.pop %v600
    %v602 = vadd.f32 %v601, 1.0
    %v603 = vrcp.pop %v602
    %v604 = vmul.f32 1.0, %v603
    %v605 = vxor.u32 %v596, 2147483648
    %v606 = vmul.f32 %v605, 1.442695
    %v607 = vpow.pop %v606
    %v608 = vadd.f32 %v607, 1.0
    %v609 = vrcp.pop %v608
    %v610 = vmul.f32 1.0, %v609
    %v611 = vtanh.pop %v597
    %v612 = vxor.u32 %v598, 2147483648
    %v613 = vmul.f32 %v612, 1.442695
    %v614 = vpow.pop %v613
    %v615 = vadd.f32 %v614, 1.0
    %v616 = vrcp.pop %v615
    %v617 = vmul.f32 1.0, %v616
    %v618 = vmul.f32 %v610, %v344
    %v619 = vmul.f32 %v604, %v611
    %v620 = vadd.f32 %v618, %v619
    %v621 = vtanh.pop %v620
    %v622 = vmul.f32 %v617, %v621
    %s623 = smul.u32 1, 4
    %s624 = smul.addr %s623, 8
    %s625 = scalar_lea.vmem [#allocation2], %s624
    %v626 = vld [vmem:[%s625] sm:$0xff]
    %v627 = vld [vmem:[%s625 + $0x8] sm:$0xff]
    %v628 = vld [vmem:[%s625 + $0x10] sm:$0xff]
    %v629 = vld [vmem:[%s625 + $0x18] sm:$0xff]
    %v630 = vpack.c.bf16 %v622, %v622
    %631 = vmatprep.subr.bf16.mxu0 %v478
    %632 = vmatpush1.bf16.msra.mxu0 %v477
    %633 = vmatprep.subr.bf16.mxu0 %v474
    %634 = vmatpush1.bf16.msra.mxu0 %v473
    %635 = vmatprep.subr.bf16.mxu0 %v470
    %636 = vmatpush1.bf16.msra.mxu0 %v469
    %637 = vmatprep.subr.bf16.mxu0 %v466
    %638 = vmatpush1.bf16.msra.mxu0 %v465
    %639 = vmatprep.subr.bf16.mxu0 %v462
    %640 = vmatpush1.bf16.msra.mxu0 %v461
    %641 = vmatprep.subr.bf16.mxu0 %v458
    %642 = vmatpush1.bf16.msra.mxu0 %v457
    %643 = vmatprep.subr.bf16.mxu0 %v454
    %644 = vmatpush1.bf16.msra.mxu0 %v453
    %645 = vmatprep.subr.bf16.mxu0 %v450
    %646 = vmatpush1.bf16.msra.mxu0 %v449
    %647 = vmatprep.subr.bf16.mxu0 0
    %648 = vmatpush2.bf16.msra.mxu0 0
    %649 = vmatprep.subr.bf16.mxu0 0
    %650 = vmatpush2.bf16.msra.mxu0 0
    %651 = vmatprep.subr.bf16.mxu0 0
    %652 = vmatpush2.bf16.msra.mxu0 0
    %653 = vmatprep.subr.bf16.mxu0 0
    %654 = vmatpush2.bf16.msra.mxu0 0
    %655 = vmatprep.subr.bf16.mxu0 0
    %656 = vmatpush2.bf16.msra.mxu0 0
    %657 = vmatprep.subr.bf16.mxu0 0
    %658 = vmatpush2.bf16.msra.mxu0 0
    %659 = vmatprep.subr.bf16.mxu0 0
    %660 = vmatpush2.bf16.msra.mxu0 0
    %661 = vmatprep.subr.bf16.mxu0 0
    %662 = vmatpush2.bf16.msra.mxu0 0
    %663 = vmatprep.mubr.bf16.mxu0 0
    %664 = vmatmul.mubr.bf16.gmra.mxu0 %v630
    %v665 = vpop.f32.mrf.mxu0
    %v666 = vadd.f32 0.0, %v665
    %v667 = vpop.f32.mrf.mxu0
    %v668 = vadd.f32 0.0, %v667
    %v669 = vpop.f32.mrf.mxu0
    %v670 = vpop.f32.mrf.mxu0
    %671 = vdwg.mxu0
    %672 = vmatprep.subr.bf16.mxu0 %v480
    %673 = vmatpush1.bf16.msra.mxu0 %v479
    %674 = vmatprep.subr.bf16.mxu0 %v476
    %675 = vmatpush1.bf16.msra.mxu0 %v475
    %676 = vmatprep.subr.bf16.mxu0 %v472
    %677 = vmatpush1.bf16.msra.mxu0 %v471
    %678 = vmatprep.subr.bf16.mxu0 %v468
    %679 = vmatpush1.bf16.msra.mxu0 %v467
    %680 = vmatprep.subr.bf16.mxu0 %v464
    %681 = vmatpush1.bf16.msra.mxu0 %v463
    %682 = vmatprep.subr.bf16.mxu0 %v460
    %683 = vmatpush1.bf16.msra.mxu0 %v459
    %684 = vmatprep.subr.bf16.mxu0 %v456
    %685 = vmatpush1.bf16.msra.mxu0 %v455
    %686 = vmatprep.subr.bf16.mxu0 %v452
    %687 = vmatpush1.bf16.msra.mxu0 %v451
    %688 = vmatprep.subr.bf16.mxu0 0
    %689 = vmatpush2.bf16.msra.mxu0 0
    %690 = vmatprep.subr.bf16.mxu0 0
    %691 = vmatpush2.bf16.msra.mxu0 0
    %692 = vmatprep.subr.bf16.mxu0 0
    %693 = vmatpush2.bf16.msra.mxu0 0
    %694 = vmatprep.subr.bf16.mxu0 0
    %695 = vmatpush2.bf16.msra.mxu0 0
    %696 = vmatprep.subr.bf16.mxu0 0
    %697 = vmatpush2.bf16.msra.mxu0 0
    %698 = vmatprep.subr.bf16.mxu0 0
    %699 = vmatpush2.bf16.msra.mxu0 0
    %700 = vmatprep.subr.bf16.mxu0 0
    %701 = vmatpush2.bf16.msra.mxu0 0
    %702 = vmatprep.subr.bf16.mxu0 0
    %703 = vmatpush2.bf16.msra.mxu0 0
    %704 = vmatprep.mubr.bf16.mxu0 0
    %705 = vmatmul.mubr.bf16.gmra.mxu0 %v630
    %v706 = vpop.f32.mrf.mxu0
    %v707 = vadd.f32 0.0, %v706
    %v708 = vpop.f32.mrf.mxu0
    %v709 = vadd.f32 0.0, %v708
    %v710 = vpop.f32.mrf.mxu0
    %v711 = vpop.f32.mrf.mxu0
    %712 = vdwg.mxu0
    %v713 = vadd.f32 %v626, %v666
    %v714 = vadd.f32 %v627, %v668
    %v715 = vadd.f32 %v628, %v707
    %v716 = vadd.f32 %v629, %v709
    %v717 = vxor.u32 %v713, 2147483648
    %v718 = vmul.f32 %v717, 1.442695
    %v719 = vpow.pop %v718
    %v720 = vadd.f32 %v719, 1.0
    %v721 = vrcp.pop %v720
    %v722 = vmul.f32 1.0, %v721
    %v723 = vxor.u32 %v714, 2147483648
    %v724 = vmul.f32 %v723, 1.442695
    %v725 = vpow.pop %v724
    %v726 = vadd.f32 %v725, 1.0
    %v727 = vrcp.pop %v726
    %v728 = vmul.f32 1.0, %v727
    %v729 = vtanh.pop %v715
    %v730 = vxor.u32 %v716, 2147483648
    %v731 = vmul.f32 %v730, 1.442695
    %v732 = vpow.pop %v731
    %v733 = vadd.f32 %v732, 1.0
    %v734 = vrcp.pop %v733
    %v735 = vmul.f32 1.0, %v734
    %v736 = vmul.f32 %v728, %v620
    %v737 = vmul.f32 %v722, %v729
    %v738 = vadd.f32 %v736, %v737
    %v739 = vtanh.pop %v738
    %v740 = vmul.f32 %v735, %v739
    %s741 = smul.u32 2, 4
    %s742 = smul.addr %s741, 8
    %s743 = scalar_lea.vmem [#allocation2], %s742
    %v744 = vld [vmem:[%s743] sm:$0xff]
    %v745 = vld [vmem:[%s743 + $0x8] sm:$0xff]
    %v746 = vld [vmem:[%s743 + $0x10] sm:$0xff]
    %v747 = vld [vmem:[%s743 + $0x18] sm:$0xff]
    %v748 = vpack.c.bf16 %v740, %v740
    %749 = vmatprep.subr.bf16.mxu0 %v478
    %750 = vmatpush1.bf16.msra.mxu0 %v477
    %751 = vmatprep.subr.bf16.mxu0 %v474
    %752 = vmatpush1.bf16.msra.mxu0 %v473
    %753 = vmatprep.subr.bf16.mxu0 %v470
    %754 = vmatpush1.bf16.msra.mxu0 %v469
    %755 = vmatprep.subr.bf16.mxu0 %v466
    %756 = vmatpush1.bf16.msra.mxu0 %v465
    %757 = vmatprep.subr.bf16.mxu0 %v462
    %758 = vmatpush1.bf16.msra.mxu0 %v461
    %759 = vmatprep.subr.bf16.mxu0 %v458
    %760 = vmatpush1.bf16.msra.mxu0 %v457
    %761 = vmatprep.subr.bf16.mxu0 %v454
    %762 = vmatpush1.bf16.msra.mxu0 %v453
    %763 = vmatprep.subr.bf16.mxu0 %v450
    %764 = vmatpush1.bf16.msra.mxu0 %v449
    %765 = vmatprep.subr.bf16.mxu0 0
    %766 = vmatpush2.bf16.msra.mxu0 0
    %767 = vmatprep.subr.bf16.mxu0 0
    %768 = vmatpush2.bf16.msra.mxu0 0
    %769 = vmatprep.subr.bf16.mxu0 0
    %770 = vmatpush2.bf16.msra.mxu0 0
    %771 = vmatprep.subr.bf16.mxu0 0
    %772 = vmatpush2.bf16.msra.mxu0 0
    %773 = vmatprep.subr.bf16.mxu0 0
    %774 = vmatpush2.bf16.msra.mxu0 0
    %775 = vmatprep.subr.bf16.mxu0 0
    %776 = vmatpush2.bf16.msra.mxu0 0
    %777 = vmatprep.subr.bf16.mxu0 0
    %778 = vmatpush2.bf16.msra.mxu0 0
    %779 = vmatprep.subr.bf16.mxu0 0
    %780 = vmatpush2.bf16.msra.mxu0 0
    %781 = vmatprep.mubr.bf16.mxu0 0
    %782 = vmatmul.mubr.bf16.gmra.mxu0 %v748
    %v783 = vpop.f32.mrf.mxu0
    %v784 = vadd.f32 0.0, %v783
    %v785 = vpop.f32.mrf.mxu0
    %v786 = vadd.f32 0.0, %v785
    %v787 = vpop.f32.mrf.mxu0
    %v788 = vpop.f32.mrf.mxu0
    %789 = vdwg.mxu0
    %790 = vmatprep.subr.bf16.mxu0 %v480
    %791 = vmatpush1.bf16.msra.mxu0 %v479
    %792 = vmatprep.subr.bf16.mxu0 %v476
    %793 = vmatpush1.bf16.msra.mxu0 %v475
    %794 = vmatprep.subr.bf16.mxu0 %v472
    %795 = vmatpush1.bf16.msra.mxu0 %v471
    %796 = vmatprep.subr.bf16.mxu0 %v468
    %797 = vmatpush1.bf16.msra.mxu0 %v467
    %798 = vmatprep.subr.bf16.mxu0 %v464
    %799 = vmatpush1.bf16.msra.mxu0 %v463
    %800 = vmatprep.subr.bf16.mxu0 %v460
    %801 = vmatpush1.bf16.msra.mxu0 %v459
    %802 = vmatprep.subr.bf16.mxu0 %v456
    %803 = vmatpush1.bf16.msra.mxu0 %v455
    %804 = vmatprep.subr.bf16.mxu0 %v452
    %805 = vmatpush1.bf16.msra.mxu0 %v451
    %806 = vmatprep.subr.bf16.mxu0 0
    %807 = vmatpush2.bf16.msra.mxu0 0
    %808 = vmatprep.subr.bf16.mxu0 0
    %809 = vmatpush2.bf16.msra.mxu0 0
    %810 = vmatprep.subr.bf16.mxu0 0
    %811 = vmatpush2.bf16.msra.mxu0 0
    %812 = vmatprep.subr.bf16.mxu0 0
    %813 = vmatpush2.bf16.msra.mxu0 0
    %814 = vmatprep.subr.bf16.mxu0 0
    %815 = vmatpush2.bf16.msra.mxu0 0
    %816 = vmatprep.subr.bf16.mxu0 0
    %817 = vmatpush2.bf16.msra.mxu0 0
    %818 = vmatprep.subr.bf16.mxu0 0
    %819 = vmatpush2.bf16.msra.mxu0 0
    %820 = vmatprep.subr.bf16.mxu0 0
    %821 = vmatpush2.bf16.msra.mxu0 0
    %822 = vmatprep.mubr.bf16.mxu0 0
    %823 = vmatmul.mubr.bf16.gmra.mxu0 %v748
    %v824 = vpop.f32.mrf.mxu0
    %v825 = vadd.f32 0.0, %v824
    %v826 = vpop.f32.mrf.mxu0
    %v827 = vadd.f32 0.0, %v826
    %v828 = vpop.f32.mrf.mxu0
    %v829 = vpop.f32.mrf.mxu0
    %830 = vdwg.mxu0
    %v831 = vadd.f32 %v744, %v784
    %v832 = vadd.f32 %v745, %v786
    %v833 = vadd.f32 %v746, %v825
    %v834 = vadd.f32 %v747, %v827
    %v835 = vxor.u32 %v831, 2147483648
    %v836 = vmul.f32 %v835, 1.442695
    %v837 = vpow.pop %v836
    %v838 = vadd.f32 %v837, 1.0
    %v839 = vrcp.pop %v838
    %v840 = vmul.f32 1.0, %v839
    %v841 = vxor.u32 %v832, 2147483648
    %v842 = vmul.f32 %v841, 1.442695
    %v843 = vpow.pop %v842
    %v844 = vadd.f32 %v843, 1.0
    %v845 = vrcp.pop %v844
    %v846 = vmul.f32 1.0, %v845
    %v847 = vtanh.pop %v833
    %v848 = vxor.u32 %v834, 2147483648
    %v849 = vmul.f32 %v848, 1.442695
    %v850 = vpow.pop %v849
    %v851 = vadd.f32 %v850, 1.0
    %v852 = vrcp.pop %v851
    %v853 = vmul.f32 1.0, %v852
    %v854 = vmul.f32 %v846, %v738
    %v855 = vmul.f32 %v840, %v847
    %v856 = vadd.f32 %v854, %v855
    %v857 = vtanh.pop %v856
    %v858 = vmul.f32 %v853, %v857
    %s859 = smul.u32 3, 4
    %s860 = smul.addr %s859, 8
    %s861 = scalar_lea.vmem [#allocation2], %s860
    %v862 = vld [vmem:[%s861] sm:$0xff]
    %v863 = vld [vmem:[%s861 + $0x8] sm:$0xff]
    %v864 = vld [vmem:[%s861 + $0x10] sm:$0xff]
    %v865 = vld [vmem:[%s861 + $0x18] sm:$0xff]
    %v866 = vpack.c.bf16 %v858, %v858
    %867 = vmatprep.subr.bf16.mxu0 %v478
    %868 = vmatpush1.bf16.msra.mxu0 %v477
    %869 = vmatprep.subr.bf16.mxu0 %v474
    %870 = vmatpush1.bf16.msra.mxu0 %v473
    %871 = vmatprep.subr.bf16.mxu0 %v470
    %872 = vmatpush1.bf16.msra.mxu0 %v469
    %873 = vmatprep.subr.bf16.mxu0 %v466
    %874 = vmatpush1.bf16.msra.mxu0 %v465
    %875 = vmatprep.subr.bf16.mxu0 %v462
    %876 = vmatpush1.bf16.msra.mxu0 %v461
    %877 = vmatprep.subr.bf16.mxu0 %v458
    %878 = vmatpush1.bf16.msra.mxu0 %v457
    %879 = vmatprep.subr.bf16.mxu0 %v454
    %880 = vmatpush1.bf16.msra.mxu0 %v453
    %881 = vmatprep.subr.bf16.mxu0 %v450
    %882 = vmatpush1.bf16.msra.mxu0 %v449
    %883 = vmatprep.subr.bf16.mxu0 0
    %884 = vmatpush2.bf16.msra.mxu0 0
    %885 = vmatprep.subr.bf16.mxu0 0
    %886 = vmatpush2.bf16.msra.mxu0 0
    %887 = vmatprep.subr.bf16.mxu0 0
    %888 = vmatpush2.bf16.msra.mxu0 0
    %889 = vmatprep.subr.bf16.mxu0 0
    %890 = vmatpush2.bf16.msra.mxu0 0
    %891 = vmatprep.subr.bf16.mxu0 0
    %892 = vmatpush2.bf16.msra.mxu0 0
    %893 = vmatprep.subr.bf16.mxu0 0
    %894 = vmatpush2.bf16.msra.mxu0 0
    %895 = vmatprep.subr.bf16.mxu0 0
    %896 = vmatpush2.bf16.msra.mxu0 0
    %897 = vmatprep.subr.bf16.mxu0 0
    %898 = vmatpush2.bf16.msra.mxu0 0
    %899 = vmatprep.mubr.bf16.mxu0 0
    %900 = vmatmul.mubr.bf16.gmra.mxu0 %v866
    %v901 = vpop.f32.mrf.mxu0
    %v902 = vadd.f32 0.0, %v901
    %v903 = vpop.f32.mrf.mxu0
    %v904 = vadd.f32 0.0, %v903
    %v905 = vpop.f32.mrf.mxu0
    %v906 = vpop.f32.mrf.mxu0
    %907 = vdwg.mxu0
    %908 = vmatprep.subr.bf16.mxu0 %v480
    %909 = vmatpush1.bf16.msra.mxu0 %v479
    %910 = vmatprep.subr.bf16.mxu0 %v476
    %911 = vmatpush1.bf16.msra.mxu0 %v475
    %912 = vmatprep.subr.bf16.mxu0 %v472
    %913 = vmatpush1.bf16.msra.mxu0 %v471
    %914 = vmatprep.subr.bf16.mxu0 %v468
    %915 = vmatpush1.bf16.msra.mxu0 %v467
    %916 = vmatprep.subr.bf16.mxu0 %v464
    %917 = vmatpush1.bf16.msra.mxu0 %v463
    %918 = vmatprep.subr.bf16.mxu0 %v460
    %919 = vmatpush1.bf16.msra.mxu0 %v459
    %920 = vmatprep.subr.bf16.mxu0 %v456
    %921 = vmatpush1.bf16.msra.mxu0 %v455
    %922 = vmatprep.subr.bf16.mxu0 %v452
    %923 = vmatpush1.bf16.msra.mxu0 %v451
    %924 = vmatprep.subr.bf16.mxu0 0
    %925 = vmatpush2.bf16.msra.mxu0 0
    %926 = vmatprep.subr.bf16.mxu0 0
    %927 = vmatpush2.bf16.msra.mxu0 0
    %928 = vmatprep.subr.bf16.mxu0 0
    %929 = vmatpush2.bf16.msra.mxu0 0
    %930 = vmatprep.subr.bf16.mxu0 0
    %931 = vmatpush2.bf16.msra.mxu0 0
    %932 = vmatprep.subr.bf16.mxu0 0
    %933 = vmatpush2.bf16.msra.mxu0 0
    %934 = vmatprep.subr.bf16.mxu0 0
    %935 = vmatpush2.bf16.msra.mxu0 0
    %936 = vmatprep.subr.bf16.mxu0 0
    %937 = vmatpush2.bf16.msra.mxu0 0
    %938 = vmatprep.subr.bf16.mxu0 0
    %939 = vmatpush2.bf16.msra.mxu0 0
    %940 = vmatprep.mubr.bf16.mxu0 0
    %941 = vmatmul.mubr.bf16.gmra.mxu0 %v866
    %v942 = vpop.f32.mrf.mxu0
    %v943 = vadd.f32 0.0, %v942
    %v944 = vpop.f32.mrf.mxu0
    %v945 = vadd.f32 0.0, %v944
    %v946 = vpop.f32.mrf.mxu0
    %v947 = vpop.f32.mrf.mxu0
    %948 = vdwg.mxu0
    %v949 = vadd.f32 %v862, %v902
    %v950 = vadd.f32 %v863, %v904
    %v951 = vadd.f32 %v864, %v943
    %v952 = vadd.f32 %v865, %v945
    %v953 = vxor.u32 %v949, 2147483648
    %v954 = vmul.f32 %v953, 1.442695
    %v955 = vpow.pop %v954
    %v956 = vadd.f32 %v955, 1.0
    %v957 = vrcp.pop %v956
    %v958 = vmul.f32 1.0, %v957
    %v959 = vxor.u32 %v950, 2147483648
    %v960 = vmul.f32 %v959, 1.442695
    %v961 = vpow.pop %v960
    %v962 = vadd.f32 %v961, 1.0
    %v963 = vrcp.pop %v962
    %v964 = vmul.f32 1.0, %v963
    %v965 = vtanh.pop %v951
    %v966 = vxor.u32 %v952, 2147483648
    %v967 = vmul.f32 %v966, 1.442695
    %v968 = vpow.pop %v967
    %v969 = vadd.f32 %v968, 1.0
    %v970 = vrcp.pop %v969
    %v971 = vmul.f32 1.0, %v970
    %v972 = vmul.f32 %v964, %v856
    %v973 = vmul.f32 %v958, %v965
    %v974 = vadd.f32 %v972, %v973
    %v975 = vtanh.pop %v974
    %v976 = vmul.f32 %v971, %v975
    %s977 = smul.u32 4, 4
    %s978 = smul.addr %s977, 8
    %s979 = scalar_lea.vmem [#allocation2], %s978
    %v980 = vld [vmem:[%s979] sm:$0xff]
    %v981 = vld [vmem:[%s979 + $0x8] sm:$0xff]
    %v982 = vld [vmem:[%s979 + $0x10] sm:$0xff]
    %v983 = vld [vmem:[%s979 + $0x18] sm:$0xff]
    %v984 = vpack.c.bf16 %v976, %v976
    %985 = vmatprep.subr.bf16.mxu0 %v478
    %986 = vmatpush1.bf16.msra.mxu0 %v477
    %987 = vmatprep.subr.bf16.mxu0 %v474
    %988 = vmatpush1.bf16.msra.mxu0 %v473
    %989 = vmatprep.subr.bf16.mxu0 %v470
    %990 = vmatpush1.bf16.msra.mxu0 %v469
    %991 = vmatprep.subr.bf16.mxu0 %v466
    %992 = vmatpush1.bf16.msra.mxu0 %v465
    %993 = vmatprep.subr.bf16.mxu0 %v462
    %994 = vmatpush1.bf16.msra.mxu0 %v461
    %995 = vmatprep.subr.bf16.mxu0 %v458
    %996 = vmatpush1.bf16.msra.mxu0 %v457
    %997 = vmatprep.subr.bf16.mxu0 %v454
    %998 = vmatpush1.bf16.msra.mxu0 %v453
    %999 = vmatprep.subr.bf16.mxu0 %v450
    %1000 = vmatpush1.bf16.msra.mxu0 %v449
    %1001 = vmatprep.subr.bf16.mxu0 0
    %1002 = vmatpush2.bf16.msra.mxu0 0
    %1003 = vmatprep.subr.bf16.mxu0 0
    %1004 = vmatpush2.bf16.msra.mxu0 0
    %1005 = vmatprep.subr.bf16.mxu0 0
    %1006 = vmatpush2.bf16.msra.mxu0 0
    %1007 = vmatprep.subr.bf16.mxu0 0
    %1008 = vmatpush2.bf16.msra.mxu0 0
    %1009 = vmatprep.subr.bf16.mxu0 0
    %1010 = vmatpush2.bf16.msra.mxu0 0
    %1011 = vmatprep.subr.bf16.mxu0 0
    %1012 = vmatpush2.bf16.msra.mxu0 0
    %1013 = vmatprep.subr.bf16.mxu0 0
    %1014 = vmatpush2.bf16.msra.mxu0 0
    %1015 = vmatprep.subr.bf16.mxu0 0
    %1016 = vmatpush2.bf16.msra.mxu0 0
    %1017 = vmatprep.mubr.bf16.mxu0 0
    %1018 = vmatmul.mubr.bf16.gmra.mxu0 %v984
    %v1019 = vpop.f32.mrf.mxu0
    %v1020 = vadd.f32 0.0, %v1019
    %v1021 = vpop.f32.mrf.mxu0
    %v1022 = vadd.f32 0.0, %v1021
    %v1023 = vpop.f32.mrf.mxu0
    %v1024 = vpop.f32.mrf.mxu0
    %1025 = vdwg.mxu0
    %1026 = vmatprep.subr.bf16.mxu0 %v480
    %1027 = vmatpush1.bf16.msra.mxu0 %v479
    %1028 = vmatprep.subr.bf16.mxu0 %v476
    %1029 = vmatpush1.bf16.msra.mxu0 %v475
    %1030 = vmatprep.subr.bf16.mxu0 %v472
    %1031 = vmatpush1.bf16.msra.mxu0 %v471
    %1032 = vmatprep.subr.bf16.mxu0 %v468
    %1033 = vmatpush1.bf16.msra.mxu0 %v467
    %1034 = vmatprep.subr.bf16.mxu0 %v464
    %1035 = vmatpush1.bf16.msra.mxu0 %v463
    %1036 = vmatprep.subr.bf16.mxu0 %v460
    %1037 = vmatpush1.bf16.msra.mxu0 %v459
    %1038 = vmatprep.subr.bf16.mxu0 %v456
    %1039 = vmatpush1.bf16.msra.mxu0 %v455
    %1040 = vmatprep.subr.bf16.mxu0 %v452
    %1041 = vmatpush1.bf16.msra.mxu0 %v451
    %1042 = vmatprep.subr.bf16.mxu0 0
    %1043 = vmatpush2.bf16.msra.mxu0 0
    %1044 = vmatprep.subr.bf16.mxu0 0
    %1045 = vmatpush2.bf16.msra.mxu0 0
    %1046 = vmatprep.subr.bf16.mxu0 0
    %1047 = vmatpush2.bf16.msra.mxu0 0
    %1048 = vmatprep.subr.bf16.mxu0 0
    %1049 = vmatpush2.bf16.msra.mxu0 0
    %1050 = vmatprep.subr.bf16.mxu0 0
    %1051 = vmatpush2.bf16.msra.mxu0 0
    %1052 = vmatprep.subr.bf16.mxu0 0
    %1053 = vmatpush2.bf16.msra.mxu0 0
    %1054 = vmatprep.subr.bf16.mxu0 0
    %1055 = vmatpush2.bf16.msra.mxu0 0
    %1056 = vmatprep.subr.bf16.mxu0 0
    %1057 = vmatpush2.bf16.msra.mxu0 0
    %1058 = vmatprep.mubr.bf16.mxu0 0
    %1059 = vmatmul.mubr.bf16.gmra.mxu0 %v984
    %v1060 = vpop.f32.mrf.mxu0
    %v1061 = vadd.f32 0.0, %v1060
    %v1062 = vpop.f32.mrf.mxu0
    %v1063 = vadd.f32 0.0, %v1062
    %v1064 = vpop.f32.mrf.mxu0
    %v1065 = vpop.f32.mrf.mxu0
    %1066 = vdwg.mxu0
    %v1067 = vadd.f32 %v980, %v1020
    %v1068 = vadd.f32 %v981, %v1022
    %v1069 = vadd.f32 %v982, %v1061
    %v1070 = vadd.f32 %v983, %v1063
    %v1071 = vxor.u32 %v1067, 2147483648
    %v1072 = vmul.f32 %v1071, 1.442695
    %v1073 = vpow.pop %v1072
    %v1074 = vadd.f32 %v1073, 1.0
    %v1075 = vrcp.pop %v1074
    %v1076 = vmul.f32 1.0, %v1075
    %v1077 = vxor.u32 %v1068, 2147483648
    %v1078 = vmul.f32 %v1077, 1.442695
    %v1079 = vpow.pop %v1078
    %v1080 = vadd.f32 %v1079, 1.0
    %v1081 = vrcp.pop %v1080
    %v1082 = vmul.f32 1.0, %v1081
    %v1083 = vtanh.pop %v1069
    %v1084 = vxor.u32 %v1070, 2147483648
    %v1085 = vmul.f32 %v1084, 1.442695
    %v1086 = vpow.pop %v1085
    %v1087 = vadd.f32 %v1086, 1.0
    %v1088 = vrcp.pop %v1087
    %v1089 = vmul.f32 1.0, %v1088
    %v1090 = vmul.f32 %v1082, %v974
    %v1091 = vmul.f32 %v1076, %v1083
    %v1092 = vadd.f32 %v1090, %v1091
    %v1093 = vtanh.pop %v1092
    %v1094 = vmul.f32 %v1089, %v1093
    %s1095 = smul.u32 5, 4
    %s1096 = smul.addr %s1095, 8
    %s1097 = scalar_lea.vmem [#allocation2], %s1096
    %v1098 = vld [vmem:[%s1097] sm:$0xff]
    %v1099 = vld [vmem:[%s1097 + $0x8] sm:$0xff]
    %v1100 = vld [vmem:[%s1097 + $0x10] sm:$0xff]
    %v1101 = vld [vmem:[%s1097 + $0x18] sm:$0xff]
    %v1102 = vpack.c.bf16 %v1094, %v1094
    %1103 = vmatprep.subr.bf16.mxu0 %v478
    %1104 = vmatpush1.bf16.msra.mxu0 %v477
    %1105 = vmatprep.subr.bf16.mxu0 %v474
    %1106 = vmatpush1.bf16.msra.mxu0 %v473
    %1107 = vmatprep.subr.bf16.mxu0 %v470
    %1108 = vmatpush1.bf16.msra.mxu0 %v469
    %1109 = vmatprep.subr.bf16.mxu0 %v466
    %1110 = vmatpush1.bf16.msra.mxu0 %v465
    %1111 = vmatprep.subr.bf16.mxu0 %v462
    %1112 = vmatpush1.bf16.msra.mxu0 %v461
    %1113 = vmatprep.subr.bf16.mxu0 %v458
    %1114 = vmatpush1.bf16.msra.mxu0 %v457
    %1115 = vmatprep.subr.bf16.mxu0 %v454
    %1116 = vmatpush1.bf16.msra.mxu0 %v453
    %1117 = vmatprep.subr.bf16.mxu0 %v450
    %1118 = vmatpush1.bf16.msra.mxu0 %v449
    %1119 = vmatprep.subr.bf16.mxu0 0
    %1120 = vmatpush2.bf16.msra.mxu0 0
    %1121 = vmatprep.subr.bf16.mxu0 0
    %1122 = vmatpush2.bf16.msra.mxu0 0
    %1123 = vmatprep.subr.bf16.mxu0 0
    %1124 = vmatpush2.bf16.msra.mxu0 0
    %1125 = vmatprep.subr.bf16.mxu0 0
    %1126 = vmatpush2.bf16.msra.mxu0 0
    %1127 = vmatprep.subr.bf16.mxu0 0
    %1128 = vmatpush2.bf16.msra.mxu0 0
    %1129 = vmatprep.subr.bf16.mxu0 0
    %1130 = vmatpush2.bf16.msra.mxu0 0
    %1131 = vmatprep.subr.bf16.mxu0 0
    %1132 = vmatpush2.bf16.msra.mxu0 0
    %1133 = vmatprep.subr.bf16.mxu0 0
    %1134 = vmatpush2.bf16.msra.mxu0 0
    %1135 = vmatprep.mubr.bf16.mxu0 0
    %1136 = vmatmul.mubr.bf16.gmra.mxu0 %v1102
    %v1137 = vpop.f32.mrf.mxu0
    %v1138 = vadd.f32 0.0, %v1137
    %v1139 = vpop.f32.mrf.mxu0
    %v1140 = vadd.f32 0.0, %v1139
    %v1141 = vpop.f32.mrf.mxu0
    %v1142 = vpop.f32.mrf.mxu0
    %1143 = vdwg.mxu0
    %1144 = vmatprep.subr.bf16.mxu0 %v480
    %1145 = vmatpush1.bf16.msra.mxu0 %v479
    %1146 = vmatprep.subr.bf16.mxu0 %v476
    %1147 = vmatpush1.bf16.msra.mxu0 %v475
    %1148 = vmatprep.subr.bf16.mxu0 %v472
    %1149 = vmatpush1.bf16.msra.mxu0 %v471
    %1150 = vmatprep.subr.bf16.mxu0 %v468
    %1151 = vmatpush1.bf16.msra.mxu0 %v467
    %1152 = vmatprep.subr.bf16.mxu0 %v464
    %1153 = vmatpush1.bf16.msra.mxu0 %v463
    %1154 = vmatprep.subr.bf16.mxu0 %v460
    %1155 = vmatpush1.bf16.msra.mxu0 %v459
    %1156 = vmatprep.subr.bf16.mxu0 %v456
    %1157 = vmatpush1.bf16.msra.mxu0 %v455
    %1158 = vmatprep.subr.bf16.mxu0 %v452
    %1159 = vmatpush1.bf16.msra.mxu0 %v451
    %1160 = vmatprep.subr.bf16.mxu0 0
    %1161 = vmatpush2.bf16.msra.mxu0 0
    %1162 = vmatprep.subr.bf16.mxu0 0
    %1163 = vmatpush2.bf16.msra.mxu0 0
    %1164 = vmatprep.subr.bf16.mxu0 0
    %1165 = vmatpush2.bf16.msra.mxu0 0
    %1166 = vmatprep.subr.bf16.mxu0 0
    %1167 = vmatpush2.bf16.msra.mxu0 0
    %1168 = vmatprep.subr.bf16.mxu0 0
    %1169 = vmatpush2.bf16.msra.mxu0 0
    %1170 = vmatprep.subr.bf16.mxu0 0
    %1171 = vmatpush2.bf16.msra.mxu0 0
    %1172 = vmatprep.subr.bf16.mxu0 0
    %1173 = vmatpush2.bf16.msra.mxu0 0
    %1174 = vmatprep.subr.bf16.mxu0 0
    %1175 = vmatpush2.bf16.msra.mxu0 0
    %1176 = vmatprep.mubr.bf16.mxu0 0
    %1177 = vmatmul.mubr.bf16.gmra.mxu0 %v1102
    %v1178 = vpop.f32.mrf.mxu0
    %v1179 = vadd.f32 0.0, %v1178
    %v1180 = vpop.f32.mrf.mxu0
    %v1181 = vadd.f32 0.0, %v1180
    %v1182 = vpop.f32.mrf.mxu0
    %v1183 = vpop.f32.mrf.mxu0
    %1184 = vdwg.mxu0
    %v1185 = vadd.f32 %v1098, %v1138
    %v1186 = vadd.f32 %v1099, %v1140
    %v1187 = vadd.f32 %v1100, %v1179
    %v1188 = vadd.f32 %v1101, %v1181
    %v1189 = vxor.u32 %v1185, 2147483648
    %v1190 = vmul.f32 %v1189, 1.442695
    %v1191 = vpow.pop %v1190
    %v1192 = vadd.f32 %v1191, 1.0
    %v1193 = vrcp.pop %v1192
    %v1194 = vmul.f32 1.0, %v1193
    %v1195 = vxor.u32 %v1186, 2147483648
    %v1196 = vmul.f32 %v1195, 1.442695
    %v1197 = vpow.pop %v1196
    %v1198 = vadd.f32 %v1197, 1.0
    %v1199 = vrcp.pop %v1198
    %v1200 = vmul.f32 1.0, %v1199
    %v1201 = vtanh.pop %v1187
    %v1202 = vxor.u32 %v1188, 2147483648
    %v1203 = vmul.f32 %v1202, 1.442695
    %v1204 = vpow.pop %v1203
    %v1205 = vadd.f32 %v1204, 1.0
    %v1206 = vrcp.pop %v1205
    %v1207 = vmul.f32 1.0, %v1206
    %v1208 = vmul.f32 %v1200, %v1092
    %v1209 = vmul.f32 %v1194, %v1201
    %v1210 = vadd.f32 %v1208, %v1209
    %v1211 = vtanh.pop %v1210
    %v1212 = vmul.f32 %v1207, %v1211
    %s1213 = smul.u32 6, 4
    %s1214 = smul.addr %s1213, 8
    %s1215 = scalar_lea.vmem [#allocation2], %s1214
    %v1216 = vld [vmem:[%s1215] sm:$0xff]
    %v1217 = vld [vmem:[%s1215 + $0x8] sm:$0xff]
    %v1218 = vld [vmem:[%s1215 + $0x10] sm:$0xff]
    %v1219 = vld [vmem:[%s1215 + $0x18] sm:$0xff]
    %v1220 = vpack.c.bf16 %v1212, %v1212
    %1221 = vmatprep.subr.bf16.mxu0 %v478
    %1222 = vmatpush1.bf16.msra.mxu0 %v477
    %1223 = vmatprep.subr.bf16.mxu0 %v474
    %1224 = vmatpush1.bf16.msra.mxu0 %v473
    %1225 = vmatprep.subr.bf16.mxu0 %v470
    %1226 = vmatpush1.bf16.msra.mxu0 %v469
    %1227 = vmatprep.subr.bf16.mxu0 %v466
    %1228 = vmatpush1.bf16.msra.mxu0 %v465
    %1229 = vmatprep.subr.bf16.mxu0 %v462
    %1230 = vmatpush1.bf16.msra.mxu0 %v461
    %1231 = vmatprep.subr.bf16.mxu0 %v458
    %1232 = vmatpush1.bf16.msra.mxu0 %v457
    %1233 = vmatprep.subr.bf16.mxu0 %v454
    %1234 = vmatpush1.bf16.msra.mxu0 %v453
    %1235 = vmatprep.subr.bf16.mxu0 %v450
    %1236 = vmatpush1.bf16.msra.mxu0 %v449
    %1237 = vmatprep.subr.bf16.mxu0 0
    %1238 = vmatpush2.bf16.msra.mxu0 0
    %1239 = vmatprep.subr.bf16.mxu0 0
    %1240 = vmatpush2.bf16.msra.mxu0 0
    %1241 = vmatprep.subr.bf16.mxu0 0
    %1242 = vmatpush2.bf16.msra.mxu0 0
    %1243 = vmatprep.subr.bf16.mxu0 0
    %1244 = vmatpush2.bf16.msra.mxu0 0
    %1245 = vmatprep.subr.bf16.mxu0 0
    %1246 = vmatpush2.bf16.msra.mxu0 0
    %1247 = vmatprep.subr.bf16.mxu0 0
    %1248 = vmatpush2.bf16.msra.mxu0 0
    %1249 = vmatprep.subr.bf16.mxu0 0
    %1250 = vmatpush2.bf16.msra.mxu0 0
    %1251 = vmatprep.subr.bf16.mxu0 0
    %1252 = vmatpush2.bf16.msra.mxu0 0
    %1253 = vmatprep.mubr.bf16.mxu0 0
    %1254 = vmatmul.mubr.bf16.gmra.mxu0 %v1220
    %v1255 = vpop.f32.mrf.mxu0
    %v1256 = vadd.f32 0.0, %v1255
    %v1257 = vpop.f32.mrf.mxu0
    %v1258 = vadd.f32 0.0, %v1257
    %v1259 = vpop.f32.mrf.mxu0
    %v1260 = vpop.f32.mrf.mxu0
    %1261 = vdwg.mxu0
    %1262 = vmatprep.subr.bf16.mxu0 %v480
    %1263 = vmatpush1.bf16.msra.mxu0 %v479
    %1264 = vmatprep.subr.bf16.mxu0 %v476
    %1265 = vmatpush1.bf16.msra.mxu0 %v475
    %1266 = vmatprep.subr.bf16.mxu0 %v472
    %1267 = vmatpush1.bf16.msra.mxu0 %v471
    %1268 = vmatprep.subr.bf16.mxu0 %v468
    %1269 = vmatpush1.bf16.msra.mxu0 %v467
    %1270 = vmatprep.subr.bf16.mxu0 %v464
    %1271 = vmatpush1.bf16.msra.mxu0 %v463
    %1272 = vmatprep.subr.bf16.mxu0 %v460
    %1273 = vmatpush1.bf16.msra.mxu0 %v459
    %1274 = vmatprep.subr.bf16.mxu0 %v456
    %1275 = vmatpush1.bf16.msra.mxu0 %v455
    %1276 = vmatprep.subr.bf16.mxu0 %v452
    %1277 = vmatpush1.bf16.msra.mxu0 %v451
    %1278 = vmatprep.subr.bf16.mxu0 0
    %1279 = vmatpush2.bf16.msra.mxu0 0
    %1280 = vmatprep.subr.bf16.mxu0 0
    %1281 = vmatpush2.bf16.msra.mxu0 0
    %1282 = vmatprep.subr.bf16.mxu0 0
    %1283 = vmatpush2.bf16.msra.mxu0 0
    %1284 = vmatprep.subr.bf16.mxu0 0
    %1285 = vmatpush2.bf16.msra.mxu0 0
    %1286 = vmatprep.subr.bf16.mxu0 0
    %1287 = vmatpush2.bf16.msra.mxu0 0
    %1288 = vmatprep.subr.bf16.mxu0 0
    %1289 = vmatpush2.bf16.msra.mxu0 0
    %1290 = vmatprep.subr.bf16.mxu0 0
    %1291 = vmatpush2.bf16.msra.mxu0 0
    %1292 = vmatprep.subr.bf16.mxu0 0
    %1293 = vmatpush2.bf16.msra.mxu0 0
    %1294 = vmatprep.mubr.bf16.mxu0 0
    %1295 = vmatmul.mubr.bf16.gmra.mxu0 %v1220
    %v1296 = vpop.f32.mrf.mxu0
    %v1297 = vadd.f32 0.0, %v1296
    %v1298 = vpop.f32.mrf.mxu0
    %v1299 = vadd.f32 0.0, %v1298
    %v1300 = vpop.f32.mrf.mxu0
    %v1301 = vpop.f32.mrf.mxu0
    %1302 = vdwg.mxu0
    %v1303 = vadd.f32 %v1216, %v1256
    %v1304 = vadd.f32 %v1217, %v1258
    %v1305 = vadd.f32 %v1218, %v1297
    %v1306 = vadd.f32 %v1219, %v1299
    %v1307 = vxor.u32 %v1303, 2147483648
    %v1308 = vmul.f32 %v1307, 1.442695
    %v1309 = vpow.pop %v1308
    %v1310 = vadd.f32 %v1309, 1.0
    %v1311 = vrcp.pop %v1310
    %v1312 = vmul.f32 1.0, %v1311
    %v1313 = vxor.u32 %v1304, 2147483648
    %v1314 = vmul.f32 %v1313, 1.442695
    %v1315 = vpow.pop %v1314
    %v1316 = vadd.f32 %v1315, 1.0
    %v1317 = vrcp.pop %v1316
    %v1318 = vmul.f32 1.0, %v1317
    %v1319 = vtanh.pop %v1305
    %v1320 = vxor.u32 %v1306, 2147483648
    %v1321 = vmul.f32 %v1320, 1.442695
    %v1322 = vpow.pop %v1321
    %v1323 = vadd.f32 %v1322, 1.0
    %v1324 = vrcp.pop %v1323
    %v1325 = vmul.f32 1.0, %v1324
    %v1326 = vmul.f32 %v1318, %v1210
    %v1327 = vmul.f32 %v1312, %v1319
    %v1328 = vadd.f32 %v1326, %v1327
    %v1329 = vtanh.pop %v1328
    %v1330 = vmul.f32 %v1325, %v1329
    %s1331 = smul.u32 7, 4
    %s1332 = smul.addr %s1331, 8
    %s1333 = scalar_lea.vmem [#allocation2], %s1332
    %v1334 = vld [vmem:[%s1333] sm:$0xff]
    %v1335 = vld [vmem:[%s1333 + $0x8] sm:$0xff]
    %v1336 = vld [vmem:[%s1333 + $0x10] sm:$0xff]
    %v1337 = vld [vmem:[%s1333 + $0x18] sm:$0xff]
    %v1338 = vpack.c.bf16 %v1330, %v1330
    %1339 = vmatprep.subr.bf16.mxu0 %v478
    %1340 = vmatpush1.bf16.msra.mxu0 %v477
    %1341 = vmatprep.subr.bf16.mxu0 %v474
    %1342 = vmatpush1.bf16.msra.mxu0 %v473
    %1343 = vmatprep.subr.bf16.mxu0 %v470
    %1344 = vmatpush1.bf16.msra.mxu0 %v469
    %1345 = vmatprep.subr.bf16.mxu0 %v466
    %1346 = vmatpush1.bf16.msra.mxu0 %v465
    %1347 = vmatprep.subr.bf16.mxu0 %v462
    %1348 = vmatpush1.bf16.msra.mxu0 %v461
    %1349 = vmatprep.subr.bf16.mxu0 %v458
    %1350 = vmatpush1.bf16.msra.mxu0 %v457
    %1351 = vmatprep.subr.bf16.mxu0 %v454
    %1352 = vmatpush1.bf16.msra.mxu0 %v453
    %1353 = vmatprep.subr.bf16.mxu0 %v450
    %1354 = vmatpush1.bf16.msra.mxu0 %v449
    %1355 = vmatprep.subr.bf16.mxu0 0
    %1356 = vmatpush2.bf16.msra.mxu0 0
    %1357 = vmatprep.subr.bf16.mxu0 0
    %1358 = vmatpush2.bf16.msra.mxu0 0
    %1359 = vmatprep.subr.bf16.mxu0 0
    %1360 = vmatpush2.bf16.msra.mxu0 0
    %1361 = vmatprep.subr.bf16.mxu0 0
    %1362 = vmatpush2.bf16.msra.mxu0 0
    %1363 = vmatprep.subr.bf16.mxu0 0
    %1364 = vmatpush2.bf16.msra.mxu0 0
    %1365 = vmatprep.subr.bf16.mxu0 0
    %1366 = vmatpush2.bf16.msra.mxu0 0
    %1367 = vmatprep.subr.bf16.mxu0 0
    %1368 = vmatpush2.bf16.msra.mxu0 0
    %1369 = vmatprep.subr.bf16.mxu0 0
    %1370 = vmatpush2.bf16.msra.mxu0 0
    %1371 = vmatprep.mubr.bf16.mxu0 0
    %1372 = vmatmul.mubr.bf16.gmra.mxu0 %v1338
    %v1373 = vpop.f32.mrf.mxu0
    %v1374 = vadd.f32 0.0, %v1373
    %v1375 = vpop.f32.mrf.mxu0
    %v1376 = vadd.f32 0.0, %v1375
    %v1377 = vpop.f32.mrf.mxu0
    %v1378 = vpop.f32.mrf.mxu0
    %1379 = vdwg.mxu0
    %1380 = vmatprep.subr.bf16.mxu0 %v480
    %1381 = vmatpush1.bf16.msra.mxu0 %v479
    %1382 = vmatprep.subr.bf16.mxu0 %v476
    %1383 = vmatpush1.bf16.msra.mxu0 %v475
    %1384 = vmatprep.subr.bf16.mxu0 %v472
    %1385 = vmatpush1.bf16.msra.mxu0 %v471
    %1386 = vmatprep.subr.bf16.mxu0 %v468
    %1387 = vmatpush1.bf16.msra.mxu0 %v467
    %1388 = vmatprep.subr.bf16.mxu0 %v464
    %1389 = vmatpush1.bf16.msra.mxu0 %v463
    %1390 = vmatprep.subr.bf16.mxu0 %v460
    %1391 = vmatpush1.bf16.msra.mxu0 %v459
    %1392 = vmatprep.subr.bf16.mxu0 %v456
    %1393 = vmatpush1.bf16.msra.mxu0 %v455
    %1394 = vmatprep.subr.bf16.mxu0 %v452
    %1395 = vmatpush1.bf16.msra.mxu0 %v451
    %1396 = vmatprep.subr.bf16.mxu0 0
    %1397 = vmatpush2.bf16.msra.mxu0 0
    %1398 = vmatprep.subr.bf16.mxu0 0
    %1399 = vmatpush2.bf16.msra.mxu0 0
    %1400 = vmatprep.subr.bf16.mxu0 0
    %1401 = vmatpush2.bf16.msra.mxu0 0
    %1402 = vmatprep.subr.bf16.mxu0 0
    %1403 = vmatpush2.bf16.msra.mxu0 0
    %1404 = vmatprep.subr.bf16.mxu0 0
    %1405 = vmatpush2.bf16.msra.mxu0 0
    %1406 = vmatprep.subr.bf16.mxu0 0
    %1407 = vmatpush2.bf16.msra.mxu0 0
    %1408 = vmatprep.subr.bf16.mxu0 0
    %1409 = vmatpush2.bf16.msra.mxu0 0
    %1410 = vmatprep.subr.bf16.mxu0 0
    %1411 = vmatpush2.bf16.msra.mxu0 0
    %1412 = vmatprep.mubr.bf16.mxu0 0
    %1413 = vmatmul.mubr.bf16.gmra.mxu0 %v1338
    %v1414 = vpop.f32.mrf.mxu0
    %v1415 = vadd.f32 0.0, %v1414
    %v1416 = vpop.f32.mrf.mxu0
    %v1417 = vadd.f32 0.0, %v1416
    %v1418 = vpop.f32.mrf.mxu0
    %v1419 = vpop.f32.mrf.mxu0
    %1420 = vdwg.mxu0
    %v1421 = vadd.f32 %v1334, %v1374
    %v1422 = vadd.f32 %v1335, %v1376
    %v1423 = vadd.f32 %v1336, %v1415
    %v1424 = vadd.f32 %v1337, %v1417
    %v1425 = vxor.u32 %v1421, 2147483648
    %v1426 = vmul.f32 %v1425, 1.442695
    %v1427 = vpow.pop %v1426
    %v1428 = vadd.f32 %v1427, 1.0
    %v1429 = vrcp.pop %v1428
    %v1430 = vmul.f32 1.0, %v1429
    %v1431 = vxor.u32 %v1422, 2147483648
    %v1432 = vmul.f32 %v1431, 1.442695
    %v1433 = vpow.pop %v1432
    %v1434 = vadd.f32 %v1433, 1.0
    %v1435 = vrcp.pop %v1434
    %v1436 = vmul.f32 1.0, %v1435
    %v1437 = vtanh.pop %v1423
    %v1438 = vxor.u32 %v1424, 2147483648
    %v1439 = vmul.f32 %v1438, 1.442695
    %v1440 = vpow.pop %v1439
    %v1441 = vadd.f32 %v1440, 1.0
    %v1442 = vrcp.pop %v1441
    %v1443 = vmul.f32 1.0, %v1442
    %v1444 = vmul.f32 %v1436, %v1328
    %v1445 = vmul.f32 %v1430, %v1437
    %v1446 = vadd.f32 %v1444, %v1445
    %v1447 = vtanh.pop %v1446
    %v1448 = vmul.f32 %v1443, %v1447
    %1449 = vst [vmem:[#allocation3] sm:$0xff] %v1448
    %1450 = vst [vmem:[#allocation4] sm:$0xff] %v1446
    // Predicated region
    $region34: #{tpu_custom_call.1} parent=1 // pred_check
      %p1451 = pneg %p40
    $region35: #{tpu_custom_call.1} parent=1 // pred_check_branch
      %1453 = sbr.rel (%p1451) target = $region37
    $region36: #{tpu_custom_call.1} parent=1 // pred_region
      %v1454 = vld [vmem:[#allocation3] sm:$0xff]
      %v1455 = vld [vmem:[%s4] sm:$0x1]
      %v1457 = vlaneseq
      %v1458 = vshrl.u32 %v1457, 7
      %v1459 = vsub.s32 0, %v1458
      %v1460 = vrot.slane %v1455, %v1459
      %v1462 = vmul.f32 %v1454, %v1460
      %1463 = vadd.xlane.f32.xlu0 %v1462
      %v1464 = vpop.xlane.xlu0 %1463
      %v1465 = vld [vmem:[#allocation5] sm:$0x1]
      %v1467 = vlaneseq
      %v1468 = vshrl.u32 %v1467, 7
      %v1469 = vsub.s32 0, %v1468
      %v1470 = vrot.slane %v1465, %v1469
      %v1472 = vadd.f32 %v1464, %v1470
      %v1473 = vxor.u32 %v1472, 2147483648
      %v1474 = vmul.f32 %v1473, 1.442695
      %v1475 = vpow.pop %v1474
      %v1476 = vadd.f32 %v1475, 1.0
      %v1477 = vrcp.pop %v1476
      %v1478 = vmul.f32 1.0, %v1477
      %vm1479 = vcmask 7168
      %1480 = vst.msk [vmem:[%s6] sm:$0xff] %vm1479, %v1478
    $region37: #{tpu_custom_call.1} parent=1 // pred_fallthru
      _
    // Predicated region
    $region38: #{tpu_custom_call.1} parent=1 // pred_check
      _
    $region39: #{tpu_custom_call.1} parent=1 // pred_check_branch
      %1482 = sbr.rel (0) target = $region41
    $region40: #{tpu_custom_call.1} parent=1 // pred_region
      _
    $region41: #{tpu_custom_call.1} parent=1 // pred_fallthru
      _
    // Predicated region
    $region42: #{tpu_custom_call.1} parent=1 // pred_check
      _
    $region43: #{tpu_custom_call.1} parent=1 // pred_check_branch
      %1484 = sbr.rel (0) target = $region45
    $region44: #{tpu_custom_call.1} parent=1 // pred_region
      _
    $region45: #{tpu_custom_call.1} parent=1 // pred_fallthru
      _
    %1485 = vsyncpa [#allocation7], 1

</llo_original>
